<compile_context>
chip_gen: v5e
topology: v5e:2x2
jax: 0.10.0
libtpu: 0.0.40
codegen_flags: <defaults>
</compile_context>

<pallas_src>
import math
import functools

import jax
import jax.numpy as jnp
from jax.experimental import pallas as pl
from jax.experimental.pallas import tpu as pltpu


def _round_up(x, m):
    return ((x + m - 1) // m) * m


def _cdiv(a, b):
    return (a + b - 1) // b


# ---------------------------------------------------------------------------
# Fused kernel: embedding Linear -> L x FANLayerGated -> output Linear
# ---------------------------------------------------------------------------
def _fan_gated_fused_kernel(
    gates_ref,              # SMEM  (Lm, 2) f32: [sigmoid(gate), 1 - sigmoid(gate)]
    x_ref,                  # VMEM  (TILE_N, IN_PAD) f32
    emb_w_ref, emb_b_ref,   # VMEM  (IN_PAD, HID_PAD) wdt, (1, HID_PAD) f32
    w_ref, b_ref,           # VMEM  (Lm, HID_PAD, PG_PAD) wdt, (Lm, 1, PG_PAD) f32
    out_w_ref, out_b_ref,   # VMEM  (HID_PAD, OUT_PAD) wdt, (1, OUT_PAD) f32
    o_ref,                  # VMEM  (TILE_N, OUT_PAD) f32
    h_ref,                  # VMEM scratch (TILE_N, HID_PAD) f32
    *, num_fan_layers, d4p, dgp, compute_dtype, gelu_approx,
):
    hid_pad = 2 * d4p + dgp
    inv_sqrt2 = 1.0 / math.sqrt(2.0)

    # Embedding: h = x @ W_emb + b_emb (padded cols of W/b are zero).
    h_ref[...] = (
        jnp.dot(x_ref[...].astype(compute_dtype), emb_w_ref[...],
                preferred_element_type=jnp.float32)
        + emb_b_ref[...]
    )

    # FAN layers, statically unrolled (L is small).
    for l in range(num_fan_layers):
        h = h_ref[...]                                   # (TILE_N, HID_PAD) f32
        # One fused matmul per layer: [p | g_pre] with a 128-aligned split.
        pg = (jnp.dot(h.astype(compute_dtype), w_ref[l],
                      preferred_element_type=jnp.float32)
              + b_ref[l])                                # (TILE_N, PG_PAD)
        p = pg[:, 0:d4p]
        g_pre = pg[:, d4p:d4p + dgp]
        if gelu_approx:
            g = jax.nn.gelu(g_pre, approximate=True)
        else:
            # exact (erf) GELU, matching nn.GELU()
            g = 0.5 * g_pre * (1.0 + jax.lax.erf(g_pre * inv_sqrt2))

        gate = gates_ref[l, 0]            # sigmoid(gate) (SMEM scalar)
        one_minus_gate = gates_ref[l, 1]  # 1 - sigmoid(gate)

        # concat([gate*cos(p), gate*sin(p), (1-gate)*g]) via lane-dense
        # slice-writes (all boundaries are multiples of 128).
        # cos pad columns become == gate; the consuming weight rows are zero.
        h_ref[:, 0:d4p] = gate * jnp.cos(p)
        h_ref[:, d4p:2 * d4p] = gate * jnp.sin(p)
        h_ref[:, 2 * d4p:hid_pad] = one_minus_gate * g

    # Output Linear, fused: o = h @ W_out + b_out (full-width unmasked store).
    o_ref[...] = (
        jnp.dot(h_ref[...].astype(compute_dtype), out_w_ref[...],
                preferred_element_type=jnp.float32)
        + out_b_ref[...]
    )


# ---------------------------------------------------------------------------
# Wrapper
# ---------------------------------------------------------------------------
def fan_gated_forward(packed, x, dims, *, tile_n=512, gelu_approx=False):
    """Full FANGated forward in one pallas_call. `packed` from pack_params."""
    n = x.shape[0]
    input_dim = dims["input_dim"]
    output_dim = dims["output_dim"]
    d4p = dims["d4p"]
    dgp = dims["dgp"]
    num_fan = dims["num_fan_layers"]

    in_pad = packed["emb_w"].shape[0]
    hid_pad = packed["emb_w"].shape[1]
    out_pad = packed["out_w"].shape[1]
    lm = packed["w_fused"].shape[0]
    pg_pad = packed["w_fused"].shape[2]
    wbytes = jnp.dtype(packed["emb_w"].dtype).itemsize

    # --- row-tile selection -------------------------------------------------
    tile_n = max(8, min(tile_n, _round_up(n, 8)))
    # Keep at least 2 grid steps when there is enough work: lets
    # dimension_semantics=("parallel",) shard across both TensorCores on v7x
    # and avoids computing (and discarding) a nearly full tile of padded rows.
    if n >= 16 and _round_up(n, tile_n) // tile_n < 2:
        tile_n = max(8, _round_up(_cdiv(n, 2), 8))
    n_pad = _round_up(n, tile_n)

    # Zero-pad the input rows/lanes once (sliced back out at the end).
    x_pad = jnp.zeros((n_pad, in_pad), jnp.float32).at[:n, :input_dim].set(x)

    # --- explicit VMEM budget -------------------------------------------------
    weight_bytes = (in_pad * hid_pad + lm * hid_pad * pg_pad
                    + hid_pad * out_pad) * wbytes           # single-buffered
    bias_bytes = (hid_pad + lm * pg_pad + out_pad) * 4
    stream_bytes = 2 * tile_n * (in_pad + out_pad) * 4      # double-buffered x/o
    scratch_bytes = tile_n * hid_pad * 4                    # resident h
    temp_bytes = 4 * tile_n * pg_pad * 4                    # pg / cos / sin / gelu
    needed = weight_bytes + bias_bytes + stream_bytes + scratch_bytes + temp_bytes
    try:
        vmem_cap = int(pltpu.get_tpu_info().vmem_capacity_bytes)
    except Exception:
        vmem_cap = 64 * 1024 * 1024
    vmem_limit = int(min(max(int(needed * 1.3), 32 * 1024 * 1024), vmem_cap))

    kernel = functools.partial(
        _fan_gated_fused_kernel,
        num_fan_layers=num_fan,
        d4p=d4p,
        dgp=dgp,
        compute_dtype=packed["emb_w"].dtype,
        gelu_approx=gelu_approx,
    )

    def resident(arr):
        # Whole array resident in VMEM for every grid step; constant index_map
        # + Buffered(1) => one DMA and ONE buffer (half the VMEM of the default
        # double-buffered pipeline for these constant operands).
        nd = arr.ndim
        return pl.BlockSpec(arr.shape, lambda i, _nd=nd: (0,) * _nd,
                            pipeline_mode=pl.Buffered(1))

    out = pl.pallas_call(
        kernel,
        out_shape=jax.ShapeDtypeStruct((n_pad, out_pad), jnp.float32),
        grid=(n_pad // tile_n,),
        in_specs=[
            pl.BlockSpec(memory_space=pltpu.MemorySpace.SMEM),   # gate scalars
            pl.BlockSpec((tile_n, in_pad), lambda i: (i, 0)),    # x tile (pipelined)
            resident(packed["emb_w"]),
            resident(packed["emb_b"]),
            resident(packed["w_fused"]),
            resident(packed["b_fused"]),
            resident(packed["out_w"]),
            resident(packed["out_b"]),
        ],
        out_specs=pl.BlockSpec((tile_n, out_pad), lambda i: (i, 0)),
        scratch_shapes=[pltpu.VMEM((tile_n, hid_pad), jnp.float32)],
        compiler_params=pltpu.CompilerParams(
            dimension_semantics=("parallel",),
            vmem_limit_bytes=vmem_limit,
        ),
    )(
        packed["gates"], x_pad,
        packed["emb_w"], packed["emb_b"],
        packed["w_fused"], packed["b_fused"],
        packed["out_w"], packed["out_b"],
    )
    return out[:n, :output_dim]


# ---------------------------------------------------------------------------
# Parameter construction / packing
# ---------------------------------------------------------------------------
def init_fan_gated_params(key, input_dim, output_dim, hidden_dim, num_layers):
    """Unpadded, PyTorch-layout-equivalent params (weights stored [in, out])."""
    assert hidden_dim % 4 == 0, "FANLayerGated needs hidden_dim divisible by 4"
    num_fan = num_layers - 1
    keys = jax.random.split(key, 4 + 5 * max(num_fan, 1))
    it = iter(keys)

    def nrm(shape, scale=0.1):
        return scale * jax.random.normal(next(it), shape, dtype=jnp.float32)

    d4 = hidden_dim // 4
    dg = hidden_dim - hidden_dim // 2

    params = {
        "emb_w": nrm((input_dim, hidden_dim)),
        "emb_b": nrm((1, hidden_dim)),
        "fan": [],
    }
    for _ in range(num_fan):
        params["fan"].append({
            "wp": nrm((hidden_dim, d4)),
            "bp": nrm((1, d4)),
            "wg": nrm((hidden_dim, dg)),
            "bg": nrm((1, dg)),
            "gate": nrm((1, 1), scale=1.0),   # nn.Parameter(torch.randn(1))
        })
    params["out_w"] = nrm((hidden_dim, output_dim))
    params["out_b"] = nrm((1, output_dim))
    return params


def pack_params(params, input_dim, hidden_dim, output_dim, *, use_bf16=False):
    """Lane-pad + permute params into the fused-kernel layout.

    h layout inside the kernel: [ cos : d4p | sin : d4p | gelu : dgp ],
    with d4p/dgp = d4/dg rounded up to 128.  Per-layer wp|wg are fused into one
    (HID_PAD, d4p+dgp) weight; weights consuming a FAN-layer output have their
    rows scattered to this padded layout (pad rows are zero, which also kills
    the non-zero cos(0)=1 pad columns of h).
    """
    assert hidden_dim % 4 == 0
    d4 = hidden_dim // 4
    dg = hidden_dim - hidden_dim // 2
    d4p = _round_up(d4, 128)
    dgp = _round_up(dg, 128)
    hid_pad = 2 * d4p + dgp
    pg_pad = d4p + dgp
    in_pad = _round_up(input_dim, 128)
    out_pad = _round_up(output_dim, 128)
    num_fan = len(params["fan"])
    lm = max(num_fan, 1)                       # guard num_fan == 0 (dummy slab)
    wdt = jnp.bfloat16 if use_bf16 else jnp.float32

    def straight_rows(w):
        # consumes the embedding-layout h (cols [0:hidden_dim], rest zero)
        return (jnp.zeros((hid_pad, w.shape[1]), jnp.float32)
                .at[:hidden_dim, :].set(w))

    def fan_rows(w):
        # consumes the FAN-layout h: [d4 @ 0 | d4 @ d4p | dg @ 2*d4p]
        out = jnp.zeros((hid_pad, w.shape[1]), jnp.float32)
        out = out.at[0:d4, :].set(w[0:d4])
        out = out.at[d4p:d4p + d4, :].set(w[d4:2 * d4])
        out = out.at[2 * d4p:2 * d4p + dg, :].set(w[2 * d4:hidden_dim])
        return out

    emb_w = jnp.zeros((in_pad, hid_pad), jnp.float32)
    emb_w = emb_w.at[:input_dim, :hidden_dim].set(params["emb_w"])
    emb_b = (jnp.zeros((1, hid_pad), jnp.float32)
             .at[:, :hidden_dim].set(params["emb_b"]))

    w_fused = jnp.zeros((lm, hid_pad, pg_pad), jnp.float32)
    b_fused = jnp.zeros((lm, 1, pg_pad), jnp.float32)
    gates = jnp.zeros((lm, 2), jnp.float32)
    for l, layer in enumerate(params["fan"]):
        rows = straight_rows if l == 0 else fan_rows
        wl = jnp.zeros((hid_pad, pg_pad), jnp.float32)
        wl = wl.at[:, 0:d4].set(rows(layer["wp"]))
        wl = wl.at[:, d4p:d4p + dg].set(rows(layer["wg"]))
        w_fused = w_fused.at[l].set(wl)
        bl = jnp.zeros((1, pg_pad), jnp.float32)
        bl = bl.at[:, 0:d4].set(layer["bp"])
        bl = bl.at[:, d4p:d4p + dg].set(layer["bg"])
        b_fused = b_fused.at[l].set(bl)
        gv = jax.nn.sigmoid(layer["gate"][0, 0])      # precomputed once
        gates = gates.at[l, 0].set(gv)
        gates = gates.at[l, 1].set(1.0 - gv)

    rows_out = fan_rows if num_fan >= 1 else straight_rows
    out_w = jnp.zeros((hid_pad, out_pad), jnp.float32)
    out_w = out_w.at[:, :output_dim].set(rows_out(params["out_w"]))
    out_b = (jnp.zeros((1, out_pad), jnp.float32)
             .at[:, :output_dim].set(params["out_b"]))

    packed = dict(
        emb_w=emb_w.astype(wdt), emb_b=emb_b,
        w_fused=w_fused.astype(wdt), b_fused=b_fused,
        gates=gates,
        out_w=out_w.astype(wdt), out_b=out_b,
    )
    dims = dict(input_dim=input_dim, hidden_dim=hidden_dim, output_dim=output_dim,
                d4p=d4p, dgp=dgp, num_fan_layers=num_fan)
    return packed, dims


# ---------------------------------------------------------------------------
# Pure-JAX reference (unpadded params)
# ---------------------------------------------------------------------------
def fan_gated_reference(params, x):
    h = x @ params["emb_w"] + params["emb_b"]
    for layer in params["fan"]:
        p = h @ layer["wp"] + layer["bp"]
        g = jax.nn.gelu(h @ layer["wg"] + layer["bg"], approximate=False)
        gate_val = jax.nn.sigmoid(layer["gate"][0, 0])
        h = jnp.concatenate(
            [gate_val * jnp.cos(p), gate_val * jnp.sin(p), (1.0 - gate_val) * g],
            axis=-1,
        )
    return h @ params["out_w"] + params["out_b"]


# ---------------------------------------------------------------------------
if __name__ == "__main__":
    # small shapes: batch of 8 tokens, input_dim=4, hidden=32, output=2, 3 layers
    INPUT_DIM, OUTPUT_DIM, HIDDEN_DIM, NUM_LAYERS = 4, 2, 32, 3
    N = 8

    key = jax.random.PRNGKey(0)
    k_x, k_p = jax.random.split(key)
    x = jax.random.normal(k_x, (N, INPUT_DIM), dtype=jnp.float32)
    params = init_fan_gated_params(k_p, INPUT_DIM, OUTPUT_DIM, HIDDEN_DIM, NUM_LAYERS)
    ref = fan_gated_reference(params, x)

    # --- f32 path (strict check) ---------------------------------------------
    packed32, dims32 = pack_params(params, INPUT_DIM, HIDDEN_DIM, OUTPUT_DIM,
                                   use_bf16=False)
    run32 = jax.jit(lambda p, xx: fan_gated_forward(p, xx, dims32, tile_n=512))
    out32 = jax.block_until_ready(run32(packed32, x))
    assert out32.shape == (N, OUTPUT_DIM)
    assert jnp.allclose(out32, ref, atol=1e-4, rtol=1e-4), "f32 mismatch vs reference"

    # --- bf16-weights path (MXU-native; relaxed tolerance) --------------------
    packed16, dims16 = pack_params(params, INPUT_DIM, HIDDEN_DIM, OUTPUT_DIM,
                                   use_bf16=True)
    run16 = jax.jit(lambda p, xx: fan_gated_forward(p, xx, dims16, tile_n=512))
    out16 = jax.block_until_ready(run16(packed16, x))
    assert out16.shape == (N, OUTPUT_DIM)
    assert jnp.allclose(out16, ref, atol=5e-2, rtol=5e-2), "bf16 mismatch vs reference"

    print("KERNEL_OK")
</pallas_src>

<mosaic_0001>
module attributes {stable_mosaic.version = 11 : i64} {
  func.func @_fan_gated_fused_kernel(%arg0: i32, %arg1: memref<2x2xf32, #tpu.memory_space<smem>>, %arg2: memref<8x128xf32, #tpu.memory_space<vmem>>, %arg3: memref<128x384xf32, #tpu.memory_space<vmem>>, %arg4: memref<1x384xf32, #tpu.memory_space<vmem>>, %arg5: memref<2x384x256xf32, #tpu.memory_space<vmem>>, %arg6: memref<2x1x256xf32, #tpu.memory_space<vmem>>, %arg7: memref<384x128xf32, #tpu.memory_space<vmem>>, %arg8: memref<1x128xf32, #tpu.memory_space<vmem>>, %arg9: memref<8x128xf32, #tpu.memory_space<vmem>>, %arg10: memref<8x384xf32, #tpu.memory_space<vmem>>) attributes {dimension_semantics = [#tpu.dimension_semantics<parallel>], iteration_bounds = array<i64: 1>, scalar_prefetch = 0 : i64, scratch_operands = 1 : i64, tpu.core_type = #tpu.core_type<tc>, window_params = [{transform_indices = @transform_0, window_bounds = array<i64: 2, 2>}, {transform_indices = @transform_1, window_bounds = array<i64: 8, 128>}, {pipeline_mode = #tpu.pipeline_mode<synchronous>, transform_indices = @transform_2, window_bounds = array<i64: 128, 384>}, {pipeline_mode = #tpu.pipeline_mode<synchronous>, transform_indices = @transform_3, window_bounds = array<i64: 1, 384>}, {pipeline_mode = #tpu.pipeline_mode<synchronous>, transform_indices = @transform_4, window_bounds = array<i64: 2, 384, 256>}, {pipeline_mode = #tpu.pipeline_mode<synchronous>, transform_indices = @transform_5, window_bounds = array<i64: 2, 1, 256>}, {pipeline_mode = #tpu.pipeline_mode<synchronous>, transform_indices = @transform_6, window_bounds = array<i64: 384, 128>}, {pipeline_mode = #tpu.pipeline_mode<synchronous>, transform_indices = @transform_7, window_bounds = array<i64: 1, 128>}, {transform_indices = @transform_8, window_bounds = array<i64: 8, 128>}]} {
    %c0 = arith.constant 0 : index
    %c0_0 = arith.constant 0 : index
    %0 = vector.load %arg2[%c0, %c0_0] : memref<8x128xf32, #tpu.memory_space<vmem>>, vector<8x128xf32>
    %c0_1 = arith.constant 0 : index
    %c0_2 = arith.constant 0 : index
    %1 = vector.load %arg3[%c0_1, %c0_2] : memref<128x384xf32, #tpu.memory_space<vmem>>, vector<128x384xf32>
    %cst = arith.constant dense<0.000000e+00> : vector<8x384xf32>
    %2 = tpu.matmul %0, %1, %cst {dimension_numbers = #tpu.dot_dimension_numbers<[1], [0], [0], [1], [0, 0, 1, 1], [], []>} : vector<8x128xf32>, vector<128x384xf32>, vector<8x384xf32> -> vector<8x384xf32>
    %c0_3 = arith.constant 0 : index
    %c0_4 = arith.constant 0 : index
    %3 = vector.load %arg4[%c0_3, %c0_4] : memref<1x384xf32, #tpu.memory_space<vmem>>, vector<1x384xf32>
    %4 = vector.broadcast %3 : vector<1x384xf32> to vector<8x384xf32>
    %5 = arith.addf %2, %4 : vector<8x384xf32>
    %c0_5 = arith.constant 0 : index
    %c0_6 = arith.constant 0 : index
    %6 = vector.load %arg10[%c0_5, %c0_6] : memref<8x384xf32, #tpu.memory_space<vmem>>, vector<8x384xf32>
    tpu.vector_store %arg10[%c0_5, %c0_6], %5 {strides = array<i32>} : memref<8x384xf32, #tpu.memory_space<vmem>>, vector<8x384xf32>,
    %c0_7 = arith.constant 0 : index
    %c0_8 = arith.constant 0 : index
    %7 = vector.load %arg10[%c0_7, %c0_8] : memref<8x384xf32, #tpu.memory_space<vmem>>, vector<8x384xf32>
    %c0_9 = arith.constant 0 : index
    %c0_10 = arith.constant 0 : index
    %c0_11 = arith.constant 0 : index
    %8 = vector.load %arg5[%c0_9, %c0_10, %c0_11] : memref<2x384x256xf32, #tpu.memory_space<vmem>>, vector<1x384x256xf32>
    %9 = vector.shape_cast %8 : vector<1x384x256xf32> to vector<384x256xf32>
    %cst_12 = arith.constant dense<0.000000e+00> : vector<8x256xf32>
    %10 = tpu.matmul %7, %9, %cst_12 {dimension_numbers = #tpu.dot_dimension_numbers<[1], [0], [0], [1], [0, 0, 1, 1], [], []>} : vector<8x384xf32>, vector<384x256xf32>, vector<8x256xf32> -> vector<8x256xf32>
    %c0_13 = arith.constant 0 : index
    %c0_14 = arith.constant 0 : index
    %c0_15 = arith.constant 0 : index
    %11 = vector.load %arg6[%c0_13, %c0_14, %c0_15] : memref<2x1x256xf32, #tpu.memory_space<vmem>>, vector<1x1x256xf32>
    %12 = vector.shape_cast %11 : vector<1x1x256xf32> to vector<1x256xf32>
    %13 = vector.broadcast %12 : vector<1x256xf32> to vector<8x256xf32>
    %14 = arith.addf %10, %13 : vector<8x256xf32>
    %15 = vector.extract_strided_slice %14 {offsets = [0, 0], sizes = [8, 128], strides = [1, 1]} : vector<8x256xf32> to vector<8x128xf32>
    %16 = vector.extract_strided_slice %14 {offsets = [0, 128], sizes = [8, 128], strides = [1, 1]} : vector<8x256xf32> to vector<8x128xf32>
    %cst_16 = arith.constant 5.000000e-01 : f32
    %17 = vector.broadcast %cst_16 : f32 to vector<8x128xf32>
    %18 = arith.mulf %17, %16 : vector<8x128xf32>
    %cst_17 = arith.constant 0.707106769 : f32
    %19 = vector.broadcast %cst_17 : f32 to vector<8x128xf32>
    %20 = arith.mulf %16, %19 : vector<8x128xf32>
    %21 = math.erf %20 : vector<8x128xf32>
    %cst_18 = arith.constant 1.000000e+00 : f32
    %22 = vector.broadcast %cst_18 : f32 to vector<8x128xf32>
    %23 = arith.addf %22, %21 : vector<8x128xf32>
    %24 = arith.mulf %18, %23 : vector<8x128xf32>
    %c0_19 = arith.constant 0 : index
    %c0_20 = arith.constant 0 : index
    %25 = memref.load %arg1[%c0_19, %c0_20] : memref<2x2xf32, #tpu.memory_space<smem>>
    %c0_21 = arith.constant 0 : index
    %c1 = arith.constant 1 : index
    %26 = memref.load %arg1[%c0_21, %c1] : memref<2x2xf32, #tpu.memory_space<smem>>
    %27 = math.cos %15 : vector<8x128xf32>
    %28 = vector.broadcast %25 : f32 to vector<8x128xf32>
    %29 = arith.mulf %28, %27 : vector<8x128xf32>
    %c0_22 = arith.constant 0 : index
    %c0_23 = arith.constant 0 : index
    %30 = vector.load %arg10[%c0_22, %c0_23] : memref<8x384xf32, #tpu.memory_space<vmem>>, vector<8x128xf32>
    tpu.vector_store %arg10[%c0_22, %c0_23], %29 {strides = array<i32>} : memref<8x384xf32, #tpu.memory_space<vmem>>, vector<8x128xf32>,
    %31 = math.sin %15 : vector<8x128xf32>
    %32 = vector.broadcast %25 : f32 to vector<8x128xf32>
    %33 = arith.mulf %32, %31 : vector<8x128xf32>
    %c0_24 = arith.constant 0 : index
    %c128 = arith.constant 128 : index
    %34 = vector.load %arg10[%c0_24, %c128] : memref<8x384xf32, #tpu.memory_space<vmem>>, vector<8x128xf32>
    tpu.vector_store %arg10[%c0_24, %c128], %33 {strides = array<i32>} : memref<8x384xf32, #tpu.memory_space<vmem>>, vector<8x128xf32>,
    %35 = vector.broadcast %26 : f32 to vector<8x128xf32>
    %36 = arith.mulf %35, %24 : vector<8x128xf32>
    %c0_25 = arith.constant 0 : index
    %c256 = arith.constant 256 : index
    %37 = vector.load %arg10[%c0_25, %c256] : memref<8x384xf32, #tpu.memory_space<vmem>>, vector<8x128xf32>
    tpu.vector_store %arg10[%c0_25, %c256], %36 {strides = array<i32>} : memref<8x384xf32, #tpu.memory_space<vmem>>, vector<8x128xf32>,
    %c0_26 = arith.constant 0 : index
    %c0_27 = arith.constant 0 : index
    %38 = vector.load %arg10[%c0_26, %c0_27] : memref<8x384xf32, #tpu.memory_space<vmem>>, vector<8x384xf32>
    %c1_28 = arith.constant 1 : index
    %c0_29 = arith.constant 0 : index
    %c0_30 = arith.constant 0 : index
    %39 = vector.load %arg5[%c1_28, %c0_29, %c0_30] : memref<2x384x256xf32, #tpu.memory_space<vmem>>, vector<1x384x256xf32>
    %40 = vector.shape_cast %39 : vector<1x384x256xf32> to vector<384x256xf32>
    %cst_31 = arith.constant dense<0.000000e+00> : vector<8x256xf32>
    %41 = tpu.matmul %38, %40, %cst_31 {dimension_numbers = #tpu.dot_dimension_numbers<[1], [0], [0], [1], [0, 0, 1, 1], [], []>} : vector<8x384xf32>, vector<384x256xf32>, vector<8x256xf32> -> vector<8x256xf32>
    %c1_32 = arith.constant 1 : index
    %c0_33 = arith.constant 0 : index
    %c0_34 = arith.constant 0 : index
    %42 = vector.load %arg6[%c1_32, %c0_33, %c0_34] : memref<2x1x256xf32, #tpu.memory_space<vmem>>, vector<1x1x256xf32>
    %43 = vector.shape_cast %42 : vector<1x1x256xf32> to vector<1x256xf32>
    %44 = vector.broadcast %43 : vector<1x256xf32> to vector<8x256xf32>
    %45 = arith.addf %41, %44 : vector<8x256xf32>
    %46 = vector.extract_strided_slice %45 {offsets = [0, 0], sizes = [8, 128], strides = [1, 1]} : vector<8x256xf32> to vector<8x128xf32>
    %47 = vector.extract_strided_slice %45 {offsets = [0, 128], sizes = [8, 128], strides = [1, 1]} : vector<8x256xf32> to vector<8x128xf32>
    %cst_35 = arith.constant 5.000000e-01 : f32
    %48 = vector.broadcast %cst_35 : f32 to vector<8x128xf32>
    %49 = arith.mulf %48, %47 : vector<8x128xf32>
    %cst_36 = arith.constant 0.707106769 : f32
    %50 = vector.broadcast %cst_36 : f32 to vector<8x128xf32>
    %51 = arith.mulf %47, %50 : vector<8x128xf32>
    %52 = math.erf %51 : vector<8x128xf32>
    %cst_37 = arith.constant 1.000000e+00 : f32
    %53 = vector.broadcast %cst_37 : f32 to vector<8x128xf32>
    %54 = arith.addf %53, %52 : vector<8x128xf32>
    %55 = arith.mulf %49, %54 : vector<8x128xf32>
    %c1_38 = arith.constant 1 : index
    %c0_39 = arith.constant 0 : index
    %56 = memref.load %arg1[%c1_38, %c0_39] : memref<2x2xf32, #tpu.memory_space<smem>>
    %c1_40 = arith.constant 1 : index
    %c1_41 = arith.constant 1 : index
    %57 = memref.load %arg1[%c1_40, %c1_41] : memref<2x2xf32, #tpu.memory_space<smem>>
    %58 = math.cos %46 : vector<8x128xf32>
    %59 = vector.broadcast %56 : f32 to vector<8x128xf32>
    %60 = arith.mulf %59, %58 : vector<8x128xf32>
    %c0_42 = arith.constant 0 : index
    %c0_43 = arith.constant 0 : index
    %61 = vector.load %arg10[%c0_42, %c0_43] : memref<8x384xf32, #tpu.memory_space<vmem>>, vector<8x128xf32>
    tpu.vector_store %arg10[%c0_42, %c0_43], %60 {strides = array<i32>} : memref<8x384xf32, #tpu.memory_space<vmem>>, vector<8x128xf32>,
    %62 = math.sin %46 : vector<8x128xf32>
    %63 = vector.broadcast %56 : f32 to vector<8x128xf32>
    %64 = arith.mulf %63, %62 : vector<8x128xf32>
    %c0_44 = arith.constant 0 : index
    %c128_45 = arith.constant 128 : index
    %65 = vector.load %arg10[%c0_44, %c128_45] : memref<8x384xf32, #tpu.memory_space<vmem>>, vector<8x128xf32>
    tpu.vector_store %arg10[%c0_44, %c128_45], %64 {strides = array<i32>} : memref<8x384xf32, #tpu.memory_space<vmem>>, vector<8x128xf32>,
    %66 = vector.broadcast %57 : f32 to vector<8x128xf32>
    %67 = arith.mulf %66, %55 : vector<8x128xf32>
    %c0_46 = arith.constant 0 : index
    %c256_47 = arith.constant 256 : index
    %68 = vector.load %arg10[%c0_46, %c256_47] : memref<8x384xf32, #tpu.memory_space<vmem>>, vector<8x128xf32>
    tpu.vector_store %arg10[%c0_46, %c256_47], %67 {strides = array<i32>} : memref<8x384xf32, #tpu.memory_space<vmem>>, vector<8x128xf32>,
    %c0_48 = arith.constant 0 : index
    %c0_49 = arith.constant 0 : index
    %69 = vector.load %arg10[%c0_48, %c0_49] : memref<8x384xf32, #tpu.memory_space<vmem>>, vector<8x384xf32>
    %c0_50 = arith.constant 0 : index
    %c0_51 = arith.constant 0 : index
    %70 = vector.load %arg7[%c0_50, %c0_51] : memref<384x128xf32, #tpu.memory_space<vmem>>, vector<384x128xf32>
    %cst_52 = arith.constant dense<0.000000e+00> : vector<8x128xf32>
    %71 = tpu.matmul %69, %70, %cst_52 {dimension_numbers = #tpu.dot_dimension_numbers<[1], [0], [0], [1], [0, 0, 1, 1], [], []>} : vector<8x384xf32>, vector<384x128xf32>, vector<8x128xf32> -> vector<8x128xf32>
    %c0_53 = arith.constant 0 : index
    %c0_54 = arith.constant 0 : index
    %72 = vector.load %arg8[%c0_53, %c0_54] : memref<1x128xf32, #tpu.memory_space<vmem>>, vector<1x128xf32>
    %73 = vector.broadcast %72 : vector<1x128xf32> to vector<8x128xf32>
    %74 = arith.addf %71, %73 : vector<8x128xf32>
    %c0_55 = arith.constant 0 : index
    %c0_56 = arith.constant 0 : index
    %75 = vector.load %arg9[%c0_55, %c0_56] : memref<8x128xf32, #tpu.memory_space<vmem>>, vector<8x128xf32>
    tpu.vector_store %arg9[%c0_55, %c0_56], %74 {strides = array<i32>} : memref<8x128xf32, #tpu.memory_space<vmem>>, vector<8x128xf32>,
    return
  }
  func.func @transform_0(%arg0: i32) -> (i32, i32) {
    %c0_i32 = arith.constant 0 : i32
    %c0_i32_0 = arith.constant 0 : i32
    %c0_i32_1 = arith.constant 0 : i32
    return %c0_i32, %c0_i32_0 : i32, i32
  }
  func.func @transform_1(%arg0: i32) -> (i32, i32) {
    %c0_i32 = arith.constant 0 : i32
    %c0_i32_0 = arith.constant 0 : i32
    return %arg0, %c0_i32 : i32, i32
  }
  func.func @transform_2(%arg0: i32) -> (i32, i32) {
    %c0_i32 = arith.constant 0 : i32
    %c0_i32_0 = arith.constant 0 : i32
    %c0_i32_1 = arith.constant 0 : i32
    return %c0_i32, %c0_i32_0 : i32, i32
  }
  func.func @transform_3(%arg0: i32) -> (i32, i32) {
    %c0_i32 = arith.constant 0 : i32
    %c0_i32_0 = arith.constant 0 : i32
    %c0_i32_1 = arith.constant 0 : i32
    return %c0_i32, %c0_i32_0 : i32, i32
  }
  func.func @transform_4(%arg0: i32) -> (i32, i32, i32) {
    %c0_i32 = arith.constant 0 : i32
    %c0_i32_0 = arith.constant 0 : i32
    %c0_i32_1 = arith.constant 0 : i32
    %c0_i32_2 = arith.constant 0 : i32
    return %c0_i32, %c0_i32_0, %c0_i32_1 : i32, i32, i32
  }
  func.func @transform_5(%arg0: i32) -> (i32, i32, i32) {
    %c0_i32 = arith.constant 0 : i32
    %c0_i32_0 = arith.constant 0 : i32
    %c0_i32_1 = arith.constant 0 : i32
    %c0_i32_2 = arith.constant 0 : i32
    return %c0_i32, %c0_i32_0, %c0_i32_1 : i32, i32, i32
  }
  func.func @transform_6(%arg0: i32) -> (i32, i32) {
    %c0_i32 = arith.constant 0 : i32
    %c0_i32_0 = arith.constant 0 : i32
    %c0_i32_1 = arith.constant 0 : i32
    return %c0_i32, %c0_i32_0 : i32, i32
  }
  func.func @transform_7(%arg0: i32) -> (i32, i32) {
    %c0_i32 = arith.constant 0 : i32
    %c0_i32_0 = arith.constant 0 : i32
    %c0_i32_1 = arith.constant 0 : i32
    return %c0_i32, %c0_i32_0 : i32, i32
  }
  func.func @transform_8(%arg0: i32) -> (i32, i32) {
    %c0_i32 = arith.constant 0 : i32
    %c0_i32_0 = arith.constant 0 : i32
    return %arg0, %c0_i32 : i32, i32
  }
}

</mosaic_0001>

<llo_original>
// kernel: _lambda_.1
$region0: #{_lambda_.1}
  #allocation0 [shape = 'u32[]', space=smem, size = 0x4, offset = 0x4, fixed_abs, tag = 'smem constant byte address 0x4 - core index']
  #allocation1 [shape = 'u32[72,128]{1,0:T(1,128)}', space=vmem, size = 0x9000, scoped, tag = 'internal scratch']
  #allocation2 [shape = 'f32[8,384]{1,0:T(8,128)}', space=vmem, size = 0x3000, scoped, tag = 'scratch operand']
  %s0 = inlined_call_operand.vmem [shape: f32[2,2], index: 0, kind: input, shape index: {}]
  %s1 = inlined_call_operand.vmem [shape: f32[8,128], index: 1, kind: input, shape index: {}]
  %s2 = inlined_call_operand.hbm [shape: f32[128,384], index: 2, kind: input, shape index: {}]
  %s3 = inlined_call_operand.vmem [shape: f32[1,384], index: 3, kind: input, shape index: {}]
  %s4 = inlined_call_operand.hbm [shape: f32[2,384,256], index: 4, kind: input, shape index: {}]
  %s5 = inlined_call_operand.vmem [shape: f32[2,1,256], index: 5, kind: input, shape index: {}]
  %s6 = inlined_call_operand.hbm [shape: f32[384,128], index: 6, kind: input, shape index: {}]
  %s7 = inlined_call_operand.vmem [shape: f32[1,128], index: 7, kind: input, shape index: {}]
  %s8 = inlined_call_operand.vmem [shape: f32[8,128], index: 8, kind: output, shape index: {}]
  %s9 = sld [smem:[#allocation0]]
  $region58: #{_lambda_.1} parent=0
    _
  %s11 = ssub.s32 1, %s9
  %s12 = scalar_select 0, %s11, %s9
  $region1: #{_lambda_.1} parent=0
    #allocation3 [shape = 'u8[1024]{0}', space=smem, size = 0x400, scoped, tag = 'input window, operand 0, single buffered']
    #allocation4 [shape = 's32[1]{0}', space=sflag, size = 0x4, scoped, tag = 'scoped memory for _lambda_.1']
    #allocation5 [shape = 's32[1]{0}', space=sflag, size = 0x4, scoped, tag = 'scoped memory for _lambda_.1']
    #allocation6 [shape = 'u8[196608]{0}', space=vmem, size = 0x30000, scoped, tag = 'input window, operand 2, single buffered']
    #allocation7 [shape = 'u8[786432]{0}', space=vmem, size = 0xc0000, scoped, tag = 'input window, operand 4, single buffered']
    #allocation8 [shape = 's32[1]{0}', space=sflag, size = 0x4, scoped, tag = 'scoped memory for _lambda_.1']
    #allocation9 [shape = 'u8[196608]{0}', space=vmem, size = 0x30000, scoped, tag = 'input window, operand 6, single buffered']
    %13 = vsyncpa [#allocation5], 0
    %14 = vsyncpa [#allocation4], 0
    %15 = vsyncpa [#allocation8], 0
    // Predicated region
    $region2: #{_lambda_.1} parent=1 // pred_check
      _
    $region3: #{_lambda_.1} parent=1 // pred_check_branch
      %17 = sbr.rel (0) target = $region5
    $region4: #{_lambda_.1} parent=1 // pred_region
      %19 = vsyncadd [#allocation5], 0
      %s21 = sshll.u32 %s0, 4
      %s22 = int_to_ptr.vmem [resolvable:$true] %s21
      %24 = dma.vmem_to_smem %s22, 32, [#allocation3], [#allocation5]
    $region5: #{_lambda_.1} parent=1 // pred_fallthru
      _
    // Predicated region
    $region6: #{_lambda_.1} parent=1 // pred_check
      _
    $region7: #{_lambda_.1} parent=1 // pred_check_branch
      %26 = sbr.rel (0) target = $region9
    $region8: #{_lambda_.1} parent=1 // pred_region
      _
    $region9: #{_lambda_.1} parent=1 // pred_fallthru
      _
    // Predicated region
    $region10: #{_lambda_.1} parent=1 // pred_check
      _
    $region11: #{_lambda_.1} parent=1 // pred_check_branch
      %28 = sbr.rel (0) target = $region13
    $region12: #{_lambda_.1} parent=1 // pred_region
      %30 = vsyncadd [#allocation4], 0
      %s31 = sshll.u32 %s2, 4
      %s32 = int_to_ptr.hbm [resolvable:$true] %s31
      %s33 = sshll.u32 [#allocation6], 4
      %s34 = int_to_ptr.vmem [resolvable:$true] %s33
      %39 = dma.hbm_to_vmem [thread:$0]  %s32, 6144, %s34, [#allocation4], 384, 384, 24
    $region13: #{_lambda_.1} parent=1 // pred_fallthru
      _
    // Predicated region
    $region14: #{_lambda_.1} parent=1 // pred_check
      _
    $region15: #{_lambda_.1} parent=1 // pred_check_branch
      %41 = sbr.rel (0) target = $region17
    $region16: #{_lambda_.1} parent=1 // pred_region
      _
    $region17: #{_lambda_.1} parent=1 // pred_fallthru
      _
    // Predicated region
    $region18: #{_lambda_.1} parent=1 // pred_check
      _
    $region19: #{_lambda_.1} parent=1 // pred_check_branch
      %43 = sbr.rel (0) target = $region21
    $region20: #{_lambda_.1} parent=1 // pred_region
      %45 = vsyncadd [#allocation8], 0
      %s46 = sshll.u32 %s4, 4
      %s47 = int_to_ptr.hbm [resolvable:$true] %s46
      %s48 = sshll.u32 [#allocation7], 4
      %s49 = int_to_ptr.vmem [resolvable:$true] %s48
      %54 = dma.hbm_to_vmem [thread:$0]  %s47, 24576, %s49, [#allocation8], 256, 256, 16
    $region21: #{_lambda_.1} parent=1 // pred_fallthru
      _
    // Predicated region
    $region22: #{_lambda_.1} parent=1 // pred_check
      _
    $region23: #{_lambda_.1} parent=1 // pred_check_branch
      %56 = sbr.rel (0) target = $region25
    $region24: #{_lambda_.1} parent=1 // pred_region
      _
    $region25: #{_lambda_.1} parent=1 // pred_fallthru
      _
    // Predicated region
    $region26: #{_lambda_.1} parent=1 // pred_check
      _
    $region27: #{_lambda_.1} parent=1 // pred_check_branch
      %58 = sbr.rel (0) target = $region29
    $region28: #{_lambda_.1} parent=1 // pred_region
      %60 = vsyncadd [#allocation8], 0
      %s61 = sshll.u32 %s6, 4
      %s62 = int_to_ptr.hbm [resolvable:$true] %s61
      %s63 = sshll.u32 [#allocation9], 4
      %s64 = int_to_ptr.vmem [resolvable:$true] %s63
      %69 = dma.hbm_to_vmem [thread:$0]  %s62, 6144, %s64, [#allocation8], 128, 128, 8
    $region29: #{_lambda_.1} parent=1 // pred_fallthru
      _
    // Predicated region
    $region30: #{_lambda_.1} parent=1 // pred_check
      _
    $region31: #{_lambda_.1} parent=1 // pred_check_branch
      %71 = sbr.rel (0) target = $region33
    $region32: #{_lambda_.1} parent=1 // pred_region
      _
    $region33: #{_lambda_.1} parent=1 // pred_fallthru
      _
    // Predicated region
    $region34: #{_lambda_.1} parent=1 // pred_check
      _
    $region35: #{_lambda_.1} parent=1 // pred_check_branch
      %73 = sbr.rel (0) target = $region37
    $region36: #{_lambda_.1} parent=1 // pred_region
      %75 = dma.done [#allocation5], 32
    $region37: #{_lambda_.1} parent=1 // pred_fallthru
      _
    // Predicated region
    $region38: #{_lambda_.1} parent=1 // pred_check
      _
    $region39: #{_lambda_.1} parent=1 // pred_check_branch
      %77 = sbr.rel (0) target = $region41
    $region40: #{_lambda_.1} parent=1 // pred_region
      %79 = dma.done [#allocation4], 6144
    $region41: #{_lambda_.1} parent=1 // pred_fallthru
      _
    // Predicated region
    $region42: #{_lambda_.1} parent=1 // pred_check
      _
    $region43: #{_lambda_.1} parent=1 // pred_check_branch
      %81 = sbr.rel (0) target = $region45
    $region44: #{_lambda_.1} parent=1 // pred_region
      %83 = dma.done [#allocation8], 24576
    $region45: #{_lambda_.1} parent=1 // pred_fallthru
      _
    // Predicated region
    $region46: #{_lambda_.1} parent=1 // pred_check
      _
    $region47: #{_lambda_.1} parent=1 // pred_check_branch
      %85 = sbr.rel (0) target = $region49
    $region48: #{_lambda_.1} parent=1 // pred_region
      %87 = dma.done [#allocation8], 6144
    $region49: #{_lambda_.1} parent=1 // pred_fallthru
      _
    %88 = sfence
    %v89 = vld [vmem:[%s1] sm:$0xff]
    %v90 = vld [vmem:[#allocation6] sm:$0xff]
    %v91 = vld [vmem:[#allocation6 + $0x8] sm:$0xff]
    %v92 = vld [vmem:[#allocation6 + $0x10] sm:$0xff]
    %v93 = vld [vmem:[#allocation6 + $0x18] sm:$0xff]
    %v94 = vld [vmem:[#allocation6 + $0x20] sm:$0xff]
    %v95 = vld [vmem:[#allocation6 + $0x28] sm:$0xff]
    %v96 = vld [vmem:[#allocation6 + $0x30] sm:$0xff]
    %v97 = vld [vmem:[#allocation6 + $0x38] sm:$0xff]
    %v98 = vld [vmem:[#allocation6 + $0x40] sm:$0xff]
    %v99 = vld [vmem:[#allocation6 + $0x48] sm:$0xff]
    %v100 = vld [vmem:[#allocation6 + $0x50] sm:$0xff]
    %v101 = vld [vmem:[#allocation6 + $0x58] sm:$0xff]
    %v102 = vld [vmem:[#allocation6 + $0x60] sm:$0xff]
    %v103 = vld [vmem:[#allocation6 + $0x68] sm:$0xff]
    %v104 = vld [vmem:[#allocation6 + $0x70] sm:$0xff]
    %v105 = vld [vmem:[#allocation6 + $0x78] sm:$0xff]
    %v106 = vld [vmem:[#allocation6 + $0x80] sm:$0xff]
    %v107 = vld [vmem:[#allocation6 + $0x88] sm:$0xff]
    %v108 = vld [vmem:[#allocation6 + $0x90] sm:$0xff]
    %v109 = vld [vmem:[#allocation6 + $0x98] sm:$0xff]
    %v110 = vld [vmem:[#allocation6 + $0xa0] sm:$0xff]
    %v111 = vld [vmem:[#allocation6 + $0xa8] sm:$0xff]
    %v112 = vld [vmem:[#allocation6 + $0xb0] sm:$0xff]
    %v113 = vld [vmem:[#allocation6 + $0xb8] sm:$0xff]
    %v114 = vld [vmem:[#allocation6 + $0xc0] sm:$0xff]
    %v115 = vld [vmem:[#allocation6 + $0xc8] sm:$0xff]
    %v116 = vld [vmem:[#allocation6 + $0xd0] sm:$0xff]
    %v117 = vld [vmem:[#allocation6 + $0xd8] sm:$0xff]
    %v118 = vld [vmem:[#allocation6 + $0xe0] sm:$0xff]
    %v119 = vld [vmem:[#allocation6 + $0xe8] sm:$0xff]
    %v120 = vld [vmem:[#allocation6 + $0xf0] sm:$0xff]
    %v121 = vld [vmem:[#allocation6 + $0xf8] sm:$0xff]
    %v122 = vld [vmem:[#allocation6 + $0x100] sm:$0xff]
    %v123 = vld [vmem:[#allocation6 + $0x108] sm:$0xff]
    %v124 = vld [vmem:[#allocation6 + $0x110] sm:$0xff]
    %v125 = vld [vmem:[#allocation6 + $0x118] sm:$0xff]
    %v126 = vld [vmem:[#allocation6 + $0x120] sm:$0xff]
    %v127 = vld [vmem:[#allocation6 + $0x128] sm:$0xff]
    %v128 = vld [vmem:[#allocation6 + $0x130] sm:$0xff]
    %v129 = vld [vmem:[#allocation6 + $0x138] sm:$0xff]
    %v130 = vld [vmem:[#allocation6 + $0x140] sm:$0xff]
    %v131 = vld [vmem:[#allocation6 + $0x148] sm:$0xff]
    %v132 = vld [vmem:[#allocation6 + $0x150] sm:$0xff]
    %v133 = vld [vmem:[#allocation6 + $0x158] sm:$0xff]
    %v134 = vld [vmem:[#allocation6 + $0x160] sm:$0xff]
    %v135 = vld [vmem:[#allocation6 + $0x168] sm:$0xff]
    %v136 = vld [vmem:[#allocation6 + $0x170] sm:$0xff]
    %v137 = vld [vmem:[#allocation6 + $0x178] sm:$0xff]
    %v138 = vld [vmem:[%s3] sm:$0x7]
    %v140 = vperm.slane %v138, 0
    %v141 = vperm.slane %v138, 1
    %v142 = vperm.slane %v138, 2
    %146 = vmatpush.msra.mxu0 %v135
    %147 = vmatpush.msra.mxu0 %v132
    %148 = vmatpush.msra.mxu0 %v129
    %149 = vmatpush.msra.mxu0 %v126
    %150 = vmatpush.msra.mxu0 %v123
    %151 = vmatpush.msra.mxu0 %v120
    %152 = vmatpush.msra.mxu0 %v117
    %153 = vmatpush.msra.mxu0 %v114
    %154 = vmatpush.msra.mxu0 %v111
    %155 = vmatpush.msra.mxu0 %v108
    %156 = vmatpush.msra.mxu0 %v105
    %157 = vmatpush.msra.mxu0 %v102
    %158 = vmatpush.msra.mxu0 %v99
    %159 = vmatpush.msra.mxu0 %v96
    %160 = vmatpush.msra.mxu0 %v93
    %161 = vmatpush.msra.mxu0 %v90
    %162 = vmatmul.f32.gmra.mxu0 %v89
    %v163 = vpop.f32.mrf.mxu0
    %v164 = vadd.f32 %v140, %v163
    %165 = vdwg.mxu0
    %166 = vmatpush.msra.mxu0 %v136
    %167 = vmatpush.msra.mxu0 %v133
    %168 = vmatpush.msra.mxu0 %v130
    %169 = vmatpush.msra.mxu0 %v127
    %170 = vmatpush.msra.mxu0 %v124
    %171 = vmatpush.msra.mxu0 %v121
    %172 = vmatpush.msra.mxu0 %v118
    %173 = vmatpush.msra.mxu0 %v115
    %174 = vmatpush.msra.mxu0 %v112
    %175 = vmatpush.msra.mxu0 %v109
    %176 = vmatpush.msra.mxu0 %v106
    %177 = vmatpush.msra.mxu0 %v103
    %178 = vmatpush.msra.mxu0 %v100
    %179 = vmatpush.msra.mxu0 %v97
    %180 = vmatpush.msra.mxu0 %v94
    %181 = vmatpush.msra.mxu0 %v91
    %182 = vmatmul.f32.gmra.mxu0 %v89
    %v183 = vpop.f32.mrf.mxu0
    %v184 = vadd.f32 %v141, %v183
    %185 = vdwg.mxu0
    %186 = vmatpush.msra.mxu0 %v137
    %187 = vmatpush.msra.mxu0 %v134
    %188 = vmatpush.msra.mxu0 %v131
    %189 = vmatpush.msra.mxu0 %v128
    %190 = vmatpush.msra.mxu0 %v125
    %191 = vmatpush.msra.mxu0 %v122
    %192 = vmatpush.msra.mxu0 %v119
    %193 = vmatpush.msra.mxu0 %v116
    %194 = vmatpush.msra.mxu0 %v113
    %195 = vmatpush.msra.mxu0 %v110
    %196 = vmatpush.msra.mxu0 %v107
    %197 = vmatpush.msra.mxu0 %v104
    %198 = vmatpush.msra.mxu0 %v101
    %199 = vmatpush.msra.mxu0 %v98
    %200 = vmatpush.msra.mxu0 %v95
    %201 = vmatpush.msra.mxu0 %v92
    %202 = vmatmul.f32.gmra.mxu0 %v89
    %v203 = vpop.f32.mrf.mxu0
    %v204 = vadd.f32 %v142, %v203
    %205 = vdwg.mxu0
    %206 = vst [vmem:[#allocation2] sm:$0xff] %v164
    %207 = vst [vmem:[#allocation2 + $0x8] sm:$0xff] %v184
    %208 = vst [vmem:[#allocation2 + $0x10] sm:$0xff] %v204
    %v209 = vld [vmem:[#allocation2] sm:$0xff]
    %v210 = vld [vmem:[#allocation2 + $0x8] sm:$0xff]
    %v211 = vld [vmem:[#allocation2 + $0x10] sm:$0xff]
    %v212 = vld [vmem:[#allocation7] sm:$0xff]
    %v213 = vld [vmem:[#allocation7 + $0x8] sm:$0xff]
    %v214 = vld [vmem:[#allocation7 + $0x10] sm:$0xff]
    %v215 = vld [vmem:[#allocation7 + $0x18] sm:$0xff]
    %v216 = vld [vmem:[#allocation7 + $0x20] sm:$0xff]
    %v217 = vld [vmem:[#allocation7 + $0x28] sm:$0xff]
    %v218 = vld [vmem:[#allocation7 + $0x30] sm:$0xff]
    %v219 = vld [vmem:[#allocation7 + $0x38] sm:$0xff]
    %v220 = vld [vmem:[#allocation7 + $0x40] sm:$0xff]
    %v221 = vld [vmem:[#allocation7 + $0x48] sm:$0xff]
    %v222 = vld [vmem:[#allocation7 + $0x50] sm:$0xff]
    %v223 = vld [vmem:[#allocation7 + $0x58] sm:$0xff]
    %v224 = vld [vmem:[#allocation7 + $0x60] sm:$0xff]
    %v225 = vld [vmem:[#allocation7 + $0x68] sm:$0xff]
    %v226 = vld [vmem:[#allocation7 + $0x70] sm:$0xff]
    %v227 = vld [vmem:[#allocation7 + $0x78] sm:$0xff]
    %v228 = vld [vmem:[#allocation7 + $0x80] sm:$0xff]
    %v229 = vld [vmem:[#allocation7 + $0x88] sm:$0xff]
    %v230 = vld [vmem:[#allocation7 + $0x90] sm:$0xff]
    %v231 = vld [vmem:[#allocation7 + $0x98] sm:$0xff]
    %v232 = vld [vmem:[#allocation7 + $0xa0] sm:$0xff]
    %v233 = vld [vmem:[#allocation7 + $0xa8] sm:$0xff]
    %v234 = vld [vmem:[#allocation7 + $0xb0] sm:$0xff]
    %v235 = vld [vmem:[#allocation7 + $0xb8] sm:$0xff]
    %v236 = vld [vmem:[#allocation7 + $0xc0] sm:$0xff]
    %v237 = vld [vmem:[#allocation7 + $0xc8] sm:$0xff]
    %v238 = vld [vmem:[#allocation7 + $0xd0] sm:$0xff]
    %v239 = vld [vmem:[#allocation7 + $0xd8] sm:$0xff]
    %v240 = vld [vmem:[#allocation7 + $0xe0] sm:$0xff]
    %v241 = vld [vmem:[#allocation7 + $0xe8] sm:$0xff]
    %v242 = vld [vmem:[#allocation7 + $0xf0] sm:$0xff]
    %v243 = vld [vmem:[#allocation7 + $0xf8] sm:$0xff]
    %v244 = vld [vmem:[#allocation7 + $0x100] sm:$0xff]
    %v245 = vld [vmem:[#allocation7 + $0x108] sm:$0xff]
    %v246 = vld [vmem:[#allocation7 + $0x110] sm:$0xff]
    %v247 = vld [vmem:[#allocation7 + $0x118] sm:$0xff]
    %v248 = vld [vmem:[#allocation7 + $0x120] sm:$0xff]
    %v249 = vld [vmem:[#allocation7 + $0x128] sm:$0xff]
    %v250 = vld [vmem:[#allocation7 + $0x130] sm:$0xff]
    %v251 = vld [vmem:[#allocation7 + $0x138] sm:$0xff]
    %v252 = vld [vmem:[#allocation7 + $0x140] sm:$0xff]
    %v253 = vld [vmem:[#allocation7 + $0x148] sm:$0xff]
    %v254 = vld [vmem:[#allocation7 + $0x150] sm:$0xff]
    %v255 = vld [vmem:[#allocation7 + $0x158] sm:$0xff]
    %v256 = vld [vmem:[#allocation7 + $0x160] sm:$0xff]
    %v257 = vld [vmem:[#allocation7 + $0x168] sm:$0xff]
    %v258 = vld [vmem:[#allocation7 + $0x170] sm:$0xff]
    %v259 = vld [vmem:[#allocation7 + $0x178] sm:$0xff]
    %v260 = vld [vmem:[#allocation7 + $0x180] sm:$0xff]
    %v261 = vld [vmem:[#allocation7 + $0x188] sm:$0xff]
    %v262 = vld [vmem:[#allocation7 + $0x190] sm:$0xff]
    %v263 = vld [vmem:[#allocation7 + $0x198] sm:$0xff]
    %v264 = vld [vmem:[#allocation7 + $0x1a0] sm:$0xff]
    %v265 = vld [vmem:[#allocation7 + $0x1a8] sm:$0xff]
    %v266 = vld [vmem:[#allocation7 + $0x1b0] sm:$0xff]
    %v267 = vld [vmem:[#allocation7 + $0x1b8] sm:$0xff]
    %v268 = vld [vmem:[#allocation7 + $0x1c0] sm:$0xff]
    %v269 = vld [vmem:[#allocation7 + $0x1c8] sm:$0xff]
    %v270 = vld [vmem:[#allocation7 + $0x1d0] sm:$0xff]
    %v271 = vld [vmem:[#allocation7 + $0x1d8] sm:$0xff]
    %v272 = vld [vmem:[#allocation7 + $0x1e0] sm:$0xff]
    %v273 = vld [vmem:[#allocation7 + $0x1e8] sm:$0xff]
    %v274 = vld [vmem:[#allocation7 + $0x1f0] sm:$0xff]
    %v275 = vld [vmem:[#allocation7 + $0x1f8] sm:$0xff]
    %v276 = vld [vmem:[#allocation7 + $0x200] sm:$0xff]
    %v277 = vld [vmem:[#allocation7 + $0x208] sm:$0xff]
    %v278 = vld [vmem:[#allocation7 + $0x210] sm:$0xff]
    %v279 = vld [vmem:[#allocation7 + $0x218] sm:$0xff]
    %v280 = vld [vmem:[#allocation7 + $0x220] sm:$0xff]
    %v281 = vld [vmem:[#allocation7 + $0x228] sm:$0xff]
    %v282 = vld [vmem:[#allocation7 + $0x230] sm:$0xff]
    %v283 = vld [vmem:[#allocation7 + $0x238] sm:$0xff]
    %v284 = vld [vmem:[#allocation7 + $0x240] sm:$0xff]
    %v285 = vld [vmem:[#allocation7 + $0x248] sm:$0xff]
    %v286 = vld [vmem:[#allocation7 + $0x250] sm:$0xff]
    %v287 = vld [vmem:[#allocation7 + $0x258] sm:$0xff]
    %v288 = vld [vmem:[#allocation7 + $0x260] sm:$0xff]
    %v289 = vld [vmem:[#allocation7 + $0x268] sm:$0xff]
    %v290 = vld [vmem:[#allocation7 + $0x270] sm:$0xff]
    %v291 = vld [vmem:[#allocation7 + $0x278] sm:$0xff]
    %v292 = vld [vmem:[#allocation7 + $0x280] sm:$0xff]
    %v293 = vld [vmem:[#allocation7 + $0x288] sm:$0xff]
    %v294 = vld [vmem:[#allocation7 + $0x290] sm:$0xff]
    %v295 = vld [vmem:[#allocation7 + $0x298] sm:$0xff]
    %v296 = vld [vmem:[#allocation7 + $0x2a0] sm:$0xff]
    %v297 = vld [vmem:[#allocation7 + $0x2a8] sm:$0xff]
    %v298 = vld [vmem:[#allocation7 + $0x2b0] sm:$0xff]
    %v299 = vld [vmem:[#allocation7 + $0x2b8] sm:$0xff]
    %v300 = vld [vmem:[#allocation7 + $0x2c0] sm:$0xff]
    %v301 = vld [vmem:[#allocation7 + $0x2c8] sm:$0xff]
    %v302 = vld [vmem:[#allocation7 + $0x2d0] sm:$0xff]
    %v303 = vld [vmem:[#allocation7 + $0x2d8] sm:$0xff]
    %v304 = vld [vmem:[#allocation7 + $0x2e0] sm:$0xff]
    %v305 = vld [vmem:[#allocation7 + $0x2e8] sm:$0xff]
    %v306 = vld [vmem:[#allocation7 + $0x2f0] sm:$0xff]
    %v307 = vld [vmem:[#allocation7 + $0x2f8] sm:$0xff]
    %v308 = vld [vmem:[%s5] sm:$0x3]
    %v310 = vperm.slane %v308, 0
    %v311 = vperm.slane %v308, 1
    %314 = vmatpush.msra.mxu0 %v242
    %315 = vmatpush.msra.mxu0 %v240
    %316 = vmatpush.msra.mxu0 %v238
    %317 = vmatpush.msra.mxu0 %v236
    %318 = vmatpush.msra.mxu0 %v234
    %319 = vmatpush.msra.mxu0 %v232
    %320 = vmatpush.msra.mxu0 %v230
    %321 = vmatpush.msra.mxu0 %v228
    %322 = vmatpush.msra.mxu0 %v226
    %323 = vmatpush.msra.mxu0 %v224
    %324 = vmatpush.msra.mxu0 %v222
    %325 = vmatpush.msra.mxu0 %v220
    %326 = vmatpush.msra.mxu0 %v218
    %327 = vmatpush.msra.mxu0 %v216
    %328 = vmatpush.msra.mxu0 %v214
    %329 = vmatpush.msra.mxu0 %v212
    %330 = vmatmul.f32.gmra.mxu0 %v209
    %v331 = vpop.f32.mrf.mxu0
    %v332 = vadd.f32 %v310, %v331
    %333 = vdwg.mxu0
    %334 = vmatpush.msra.mxu0 %v274
    %335 = vmatpush.msra.mxu0 %v272
    %336 = vmatpush.msra.mxu0 %v270
    %337 = vmatpush.msra.mxu0 %v268
    %338 = vmatpush.msra.mxu0 %v266
    %339 = vmatpush.msra.mxu0 %v264
    %340 = vmatpush.msra.mxu0 %v262
    %341 = vmatpush.msra.mxu0 %v260
    %342 = vmatpush.msra.mxu0 %v258
    %343 = vmatpush.msra.mxu0 %v256
    %344 = vmatpush.msra.mxu0 %v254
    %345 = vmatpush.msra.mxu0 %v252
    %346 = vmatpush.msra.mxu0 %v250
    %347 = vmatpush.msra.mxu0 %v248
    %348 = vmatpush.msra.mxu0 %v246
    %349 = vmatpush.msra.mxu0 %v244
    %350 = vmatmul.f32.gmra.mxu0 %v210
    %v351 = vpop.f32.mrf.mxu0
    %v352 = vadd.f32 %v332, %v351
    %353 = vdwg.mxu0
    %354 = vmatpush.msra.mxu0 %v306
    %355 = vmatpush.msra.mxu0 %v304
    %356 = vmatpush.msra.mxu0 %v302
    %357 = vmatpush.msra.mxu0 %v300
    %358 = vmatpush.msra.mxu0 %v298
    %359 = vmatpush.msra.mxu0 %v296
    %360 = vmatpush.msra.mxu0 %v294
    %361 = vmatpush.msra.mxu0 %v292
    %362 = vmatpush.msra.mxu0 %v290
    %363 = vmatpush.msra.mxu0 %v288
    %364 = vmatpush.msra.mxu0 %v286
    %365 = vmatpush.msra.mxu0 %v284
    %366 = vmatpush.msra.mxu0 %v282
    %367 = vmatpush.msra.mxu0 %v280
    %368 = vmatpush.msra.mxu0 %v278
    %369 = vmatpush.msra.mxu0 %v276
    %370 = vmatmul.f32.gmra.mxu0 %v211
    %v371 = vpop.f32.mrf.mxu0
    %v372 = vadd.f32 %v352, %v371
    %373 = vdwg.mxu0
    %374 = vmatpush.msra.mxu0 %v243
    %375 = vmatpush.msra.mxu0 %v241
    %376 = vmatpush.msra.mxu0 %v239
    %377 = vmatpush.msra.mxu0 %v237
    %378 = vmatpush.msra.mxu0 %v235
    %379 = vmatpush.msra.mxu0 %v233
    %380 = vmatpush.msra.mxu0 %v231
    %381 = vmatpush.msra.mxu0 %v229
    %382 = vmatpush.msra.mxu0 %v227
    %383 = vmatpush.msra.mxu0 %v225
    %384 = vmatpush.msra.mxu0 %v223
    %385 = vmatpush.msra.mxu0 %v221
    %386 = vmatpush.msra.mxu0 %v219
    %387 = vmatpush.msra.mxu0 %v217
    %388 = vmatpush.msra.mxu0 %v215
    %389 = vmatpush.msra.mxu0 %v213
    %390 = vmatmul.f32.gmra.mxu0 %v209
    %v391 = vpop.f32.mrf.mxu0
    %v392 = vadd.f32 %v311, %v391
    %393 = vdwg.mxu0
    %394 = vmatpush.msra.mxu0 %v275
    %395 = vmatpush.msra.mxu0 %v273
    %396 = vmatpush.msra.mxu0 %v271
    %397 = vmatpush.msra.mxu0 %v269
    %398 = vmatpush.msra.mxu0 %v267
    %399 = vmatpush.msra.mxu0 %v265
    %400 = vmatpush.msra.mxu0 %v263
    %401 = vmatpush.msra.mxu0 %v261
    %402 = vmatpush.msra.mxu0 %v259
    %403 = vmatpush.msra.mxu0 %v257
    %404 = vmatpush.msra.mxu0 %v255
    %405 = vmatpush.msra.mxu0 %v253
    %406 = vmatpush.msra.mxu0 %v251
    %407 = vmatpush.msra.mxu0 %v249
    %408 = vmatpush.msra.mxu0 %v247
    %409 = vmatpush.msra.mxu0 %v245
    %410 = vmatmul.f32.gmra.mxu0 %v210
    %v411 = vpop.f32.mrf.mxu0
    %v412 = vadd.f32 %v392, %v411
    %413 = vdwg.mxu0
    %414 = vmatpush.msra.mxu0 %v307
    %415 = vmatpush.msra.mxu0 %v305
    %416 = vmatpush.msra.mxu0 %v303
    %417 = vmatpush.msra.mxu0 %v301
    %418 = vmatpush.msra.mxu0 %v299
    %419 = vmatpush.msra.mxu0 %v297
    %420 = vmatpush.msra.mxu0 %v295
    %421 = vmatpush.msra.mxu0 %v293
    %422 = vmatpush.msra.mxu0 %v291
    %423 = vmatpush.msra.mxu0 %v289
    %424 = vmatpush.msra.mxu0 %v287
    %425 = vmatpush.msra.mxu0 %v285
    %426 = vmatpush.msra.mxu0 %v283
    %427 = vmatpush.msra.mxu0 %v281
    %428 = vmatpush.msra.mxu0 %v279
    %429 = vmatpush.msra.mxu0 %v277
    %430 = vmatmul.f32.gmra.mxu0 %v211
    %v431 = vpop.f32.mrf.mxu0
    %v432 = vadd.f32 %v412, %v431
    %433 = vdwg.mxu0
    %v434 = vmul.f32 %v432, 0.5
    %v435 = vmul.f32 %v432, 0.70710677
    %v436 = vmul.f32 %v435, %v435
    %v437 = vmin.f32 16.0, %v436
    %v438 = vmul.f32 %v437, 2.1237322e-06
    %v439 = vadd.f32 %v438, 0.00028619796
    %v440 = vmul.f32 %v437, %v439
    %v441 = vadd.f32 %v440, 0.0036580483
    %v442 = vmul.f32 %v437, %v441
    %v443 = vadd.f32 %v442, 0.05243302
    %v444 = vmul.f32 %v437, %v443
    %v445 = vadd.f32 %v444, 0.18741608
    %v446 = vmul.f32 %v437, %v445
    %v447 = vadd.f32 %v446, 1.1283791
    %v448 = vmul.f32 %v435, %v447
    %v449 = vmul.f32 %v437, 3.8918573e-05
    %v450 = vadd.f32 %v449, 0.001143296
    %v451 = vmul.f32 %v437, %v450
    %v452 = vadd.f32 %v451, 0.014752088
    %v453 = vmul.f32 %v437, %v452
    %v454 = vadd.f32 %v453, 0.112945676
    %v455 = vmul.f32 %v437, %v454
    %v456 = vadd.f32 %v455, 0.4994258
    %v457 = vmul.f32 %v437, %v456
    %v458 = vadd.f32 %v457, 1.0
    %v459 = vrcp.pop %v458
    %v460 = vmul.f32 %v458, %v459
    %v461 = vsub.f32 1.0, %v460
    %v462 = vmul.f32 %v459, %v461
    %v463 = vadd.f32 %v459, %v462
    %vm464 = vweird.f32 %v458
    %vm465 = vweird.f32 %v459
    %vm466 = vmor %vm464, %vm465
    %v467 = vsel %vm466, %v459, %v463
    %v468 = vand.u32 2147483647, %v458
    %vm469 = vcmp.eq.f32.partialorder %v468, 8.507059e+37
    %v470 = vand.u32 %v458, 2147483648
    %v471 = vor.u32 1.1754944e-38, %v470
    %v472 = vsel %vm469, %v471, %v467
    %v473 = vmul.f32 %v448, %v472
    %v474 = vmin.f32 %v473, 1.0
    %v475 = vmax.f32 %v474, -1.0
    %v476 = vadd.f32 %v475, 1.0
    %v477 = vmul.f32 %v434, %v476
    %s478 = sld [smem:[#allocation3]]
    %s479 = sld [smem:[#allocation3 + $0x1]]
    %v480 = vand.u32 2147483647, %v372
    %vm481 = vcmp.le.f32.partialorder %v480, 0.7853982
    %vm482 = vcmp.lt.s32.totalorder %v372, 0
    %v483 = vand.u32 %v372, 2139095040
    %v484 = vshrl.u32 %v483, 23
    %v485 = vsub.s32 %v484, 127
    %v486 = vand.u32 2147483647, %v372
    %v487 = vand.u32 %v486, 8388607
    %v488 = vor.u32 %v487, 8388608
    %v489 = vsub.s32 0, %v488
    %v490 = vadd.s32 %v485, 1
    %vm491 = vcmp.gt.s32.totalorder %v490, 0
    %v492 = vsel %vm491, %v490, 0
    %v493 = vshrl.u32 %v492, 5
    %v494 = vand.u32 %v492, 31
    %v495 = vsub.s32 32, %v494
    %v496 = vshrl.u32 683565275, %v495
    %v497 = vshll.u32 683565275, %v494
    %v498 = vshrl.u32 2475754826, %v495
    %v499 = vor.u32 %v497, %v498
    %v500 = vshll.u32 2475754826, %v494
    %v501 = vshrl.u32 2131351028, %v495
    %v502 = vor.u32 %v500, %v501
    %v503 = vshll.u32 2131351028, %v494
    %v504 = vshrl.u32 2102212464, %v495
    %v505 = vor.u32 %v503, %v504
    %v506 = vshll.u32 2102212464, %v494
    %v507 = vshrl.u32 920167782, %v495
    %v508 = vor.u32 %v506, %v507
    %v509 = vshll.u32 920167782, %v494
    %v510 = vshrl.u32 1326507024, %v495
    %v511 = vor.u32 %v509, %v510
    %vm512 = vcmp.lt.s32.totalorder %v493, 1
    %vm513 = vcmp.lt.s32.totalorder %v493, 2
    %vm514 = vcmp.lt.s32.totalorder %v493, 3
    %vm515 = vcmp.lt.s32.totalorder %v493, 4
    %v516 = vsel %vm512, %v496, %v499
    %v517 = vsel %vm515, %v505, 2102212464
    %v518 = vsel %vm514, %v502, %v517
    %v519 = vsel %vm513, %v516, %v518
    %v520 = vsel %vm512, %v499, %v502
    %v521 = vsel %vm515, %v508, 920167782
    %v522 = vsel %vm514, %v505, %v521
    %v523 = vsel %vm513, %v520, %v522
    %v524 = vsel %vm512, %v502, %v505
    %v525 = vsel %vm515, %v511, 1326507024
    %v526 = vsel %vm514, %v508, %v525
    %v527 = vsel %vm513, %v524, %v526
    %v528 = vshll.u32 %v488, 8
    %v529 = vand.u32 %v528, 65535
    %v530 = vshrl.u32 %v528, 16
    %v531 = vand.u32 %v527, 65535
    %v532 = vshrl.u32 %v527, 16
    %v533 = vmul.u32 %v529, %v531
    %v534 = vmul.u32 %v529, %v532
    %v535 = vmul.u32 %v530, %v531
    %v536 = vmul.u32 %v530, %v532
    %v537 = vshll.u32 %v534, 16
    %v538 = vshrl.u32 %v534, 16
    %v539 = vshll.u32 %v535, 16
    %v540 = vshrl.u32 %v535, 16
    %vm541 = vc.u32 %v533, %v537
    %v542 = vsel %vm541, 1, 0
    %v543 = vadd.s32 %v533, %v537
    %v544 = vadd.s32 %v536, %v542
    %vm545 = vc.u32 %v543, %v539
    %v546 = vsel %vm545, 1, 0
    %v547 = vadd.s32 %v543, %v539
    %v548 = vadd.s32 %v544, %v546
    %v549 = vadd.s32 %v548, %v538
    %v550 = vadd.s32 %v549, %v540
    %v551 = vand.u32 %v528, 65535
    %v552 = vshrl.u32 %v528, 16
    %v553 = vand.u32 %v523, 65535
    %v554 = vshrl.u32 %v523, 16
    %v555 = vmul.u32 %v551, %v553
    %v556 = vmul.u32 %v551, %v554
    %v557 = vmul.u32 %v552, %v553
    %v558 = vmul.u32 %v552, %v554
    %v559 = vshll.u32 %v556, 16
    %v560 = vshrl.u32 %v556, 16
    %v561 = vshll.u32 %v557, 16
    %v562 = vshrl.u32 %v557, 16
    %vm563 = vc.u32 %v555, %v559
    %v564 = vsel %vm563, 1, 0
    %v565 = vadd.s32 %v555, %v559
    %v566 = vadd.s32 %v558, %v564
    %vm567 = vc.u32 %v565, %v561
    %v568 = vsel %vm567, 1, 0
    %v569 = vadd.s32 %v565, %v561
    %v570 = vadd.s32 %v566, %v568
    %v571 = vadd.s32 %v570, %v560
    %v572 = vadd.s32 %v571, %v562
    %v573 = vmul.u32 %v528, %v519
    %v574 = vadd.s32 %v550, %v569
    %vm575 = vc.u32 %v550, %v569
    %v576 = vadd.s32 %v572, 1
    %v577 = vsel %vm575, %v576, %v572
    %v578 = vadd.s32 %v573, %v577
    %v579 = vadd.s32 %v578, 536870912
    %v580 = vshrl.u32 %v579, 30
    %v581 = vshll.u32 %v580, 30
    %v582 = vsub.s32 %v578, %v581
    %vm583 = vcmp.lt.s32.totalorder %v582, 0
    %v584 = vsub.s32 0, %v582
    %v585 = vsel %vm583, %v584, %v582
    %v586 = vclz %v585
    %v587 = vsub.s32 %v586, 2
    %vm588 = vcmp.gt.s32.totalorder 0, %v587
    %v589 = vsel %vm588, 0, %v587
    %v590 = vsub.s32 32, %v589
    %v591 = vshll.u32 %v582, %v589
    %v592 = vshrl.u32 %v574, %v590
    %v593 = vor.u32 %v591, %v592
    %v594 = vsub.s32 4294967266, %v589
    %v595 = vadd.s32 %v594, 127
    %v596 = vshll.u32 %v595, 23
    %v597 = vor.u32 4788187, %v596
    %v598 = vand.u32 2147483647, %v597
    %v600 = vcvt.s32.f32 %v593
    %v601 = vmul.f32 %v600, %v598
    %v602 = vxor.u32 %v601, 2147483648
    %v603 = vsel %vm482, %v602, %v601
    %v604 = vsub.s32 4, %v580
    %v605 = vsel %vm482, %v604, %v580
    %v606 = vsel %vm481, %v372, %v603
    %v607 = vsel %vm481, 0, %v605
    %v608 = vmul.f32 %v606, %v606
    %v609 = vmul.f32 %v608, -0.001358992
    %v610 = vadd.f32 %v609, 0.041655596
    %v611 = vmul.f32 %v608, %v610
    %v612 = vadd.f32 %v611, -0.4999988
    %v613 = vmul.f32 %v608, %v612
    %v614 = vadd.f32 1.0, %v613
    %v615 = vmul.f32 %v606, %v606
    %v616 = vmul.f32 %v615, -0.00019511016
    %v617 = vadd.f32 %v616, 0.008332121
    %v618 = vmul.f32 %v615, %v617
    %v619 = vadd.f32 %v618, -0.16666654
    %v620 = vmul.f32 %v615, %v619
    %v621 = vadd.f32 %v620, 1.0
    %v622 = vmul.f32 %v621, %v606
    %vm623 = vweird.f32 %v372
    %v624 = vand.u32 %v607, 3
    %vm625 = vcmp.lt.s32.totalorder %v624, 2
    %vm626 = vcmp.eq.s32.totalorder %v624, 0
    %v627 = vxor.u32 %v622, 2147483648
    %v628 = vsel %vm626, %v614, %v627
    %vm629 = vcmp.eq.s32.totalorder %v624, 2
    %v630 = vxor.u32 %v614, 2147483648
    %v631 = vsel %vm629, %v630, %v622
    %v632 = vsel %vm625, %v628, %v631
    %v633 = vsel %vm623, nan, %v632
    %v634 = vstv %s478
    %v635 = vmul.f32 %v634, %v633
    %636 = vst [vmem:[#allocation2] sm:$0xff] %v635
    %v637 = vand.u32 2147483647, %v372
    %vm638 = vcmp.le.f32.partialorder %v637, 0.7853982
    %vm639 = vcmp.lt.s32.totalorder %v372, 0
    %v640 = vand.u32 %v372, 2139095040
    %v641 = vshrl.u32 %v640, 23
    %v642 = vsub.s32 %v641, 127
    %v643 = vand.u32 2147483647, %v372
    %v644 = vand.u32 %v643, 8388607
    %v645 = vor.u32 %v644, 8388608
    %v646 = vsub.s32 0, %v645
    %v647 = vadd.s32 %v642, 1
    %vm648 = vcmp.gt.s32.totalorder %v647, 0
    %v649 = vsel %vm648, %v647, 0
    %v650 = vshrl.u32 %v649, 5
    %v651 = vand.u32 %v649, 31
    %v652 = vsub.s32 32, %v651
    %v653 = vshrl.u32 683565275, %v652
    %v654 = vshll.u32 683565275, %v651
    %v655 = vshrl.u32 2475754826, %v652
    %v656 = vor.u32 %v654, %v655
    %v657 = vshll.u32 2475754826, %v651
    %v658 = vshrl.u32 2131351028, %v652
    %v659 = vor.u32 %v657, %v658
    %v660 = vshll.u32 2131351028, %v651
    %v661 = vshrl.u32 2102212464, %v652
    %v662 = vor.u32 %v660, %v661
    %v663 = vshll.u32 2102212464, %v651
    %v664 = vshrl.u32 920167782, %v652
    %v665 = vor.u32 %v663, %v664
    %v666 = vshll.u32 920167782, %v651
    %v667 = vshrl.u32 1326507024, %v652
    %v668 = vor.u32 %v666, %v667
    %vm669 = vcmp.lt.s32.totalorder %v650, 1
    %vm670 = vcmp.lt.s32.totalorder %v650, 2
    %vm671 = vcmp.lt.s32.totalorder %v650, 3
    %vm672 = vcmp.lt.s32.totalorder %v650, 4
    %v673 = vsel %vm669, %v653, %v656
    %v674 = vsel %vm672, %v662, 2102212464
    %v675 = vsel %vm671, %v659, %v674
    %v676 = vsel %vm670, %v673, %v675
    %v677 = vsel %vm669, %v656, %v659
    %v678 = vsel %vm672, %v665, 920167782
    %v679 = vsel %vm671, %v662, %v678
    %v680 = vsel %vm670, %v677, %v679
    %v681 = vsel %vm669, %v659, %v662
    %v682 = vsel %vm672, %v668, 1326507024
    %v683 = vsel %vm671, %v665, %v682
    %v684 = vsel %vm670, %v681, %v683
    %v685 = vshll.u32 %v645, 8
    %v686 = vand.u32 %v685, 65535
    %v687 = vshrl.u32 %v685, 16
    %v688 = vand.u32 %v684, 65535
    %v689 = vshrl.u32 %v684, 16
    %v690 = vmul.u32 %v686, %v688
    %v691 = vmul.u32 %v686, %v689
    %v692 = vmul.u32 %v687, %v688
    %v693 = vmul.u32 %v687, %v689
    %v694 = vshll.u32 %v691, 16
    %v695 = vshrl.u32 %v691, 16
    %v696 = vshll.u32 %v692, 16
    %v697 = vshrl.u32 %v692, 16
    %vm698 = vc.u32 %v690, %v694
    %v699 = vsel %vm698, 1, 0
    %v700 = vadd.s32 %v690, %v694
    %v701 = vadd.s32 %v693, %v699
    %vm702 = vc.u32 %v700, %v696
    %v703 = vsel %vm702, 1, 0
    %v704 = vadd.s32 %v700, %v696
    %v705 = vadd.s32 %v701, %v703
    %v706 = vadd.s32 %v705, %v695
    %v707 = vadd.s32 %v706, %v697
    %v708 = vand.u32 %v685, 65535
    %v709 = vshrl.u32 %v685, 16
    %v710 = vand.u32 %v680, 65535
    %v711 = vshrl.u32 %v680, 16
    %v712 = vmul.u32 %v708, %v710
    %v713 = vmul.u32 %v708, %v711
    %v714 = vmul.u32 %v709, %v710
    %v715 = vmul.u32 %v709, %v711
    %v716 = vshll.u32 %v713, 16
    %v717 = vshrl.u32 %v713, 16
    %v718 = vshll.u32 %v714, 16
    %v719 = vshrl.u32 %v714, 16
    %vm720 = vc.u32 %v712, %v716
    %v721 = vsel %vm720, 1, 0
    %v722 = vadd.s32 %v712, %v716
    %v723 = vadd.s32 %v715, %v721
    %vm724 = vc.u32 %v722, %v718
    %v725 = vsel %vm724, 1, 0
    %v726 = vadd.s32 %v722, %v718
    %v727 = vadd.s32 %v723, %v725
    %v728 = vadd.s32 %v727, %v717
    %v729 = vadd.s32 %v728, %v719
    %v730 = vmul.u32 %v685, %v676
    %v731 = vadd.s32 %v707, %v726
    %vm732 = vc.u32 %v707, %v726
    %v733 = vadd.s32 %v729, 1
    %v734 = vsel %vm732, %v733, %v729
    %v735 = vadd.s32 %v730, %v734
    %v736 = vadd.s32 %v735, 536870912
    %v737 = vshrl.u32 %v736, 30
    %v738 = vshll.u32 %v737, 30
    %v739 = vsub.s32 %v735, %v738
    %vm740 = vcmp.lt.s32.totalorder %v739, 0
    %v741 = vsub.s32 0, %v739
    %v742 = vsel %vm740, %v741, %v739
    %v743 = vclz %v742
    %v744 = vsub.s32 %v743, 2
    %vm745 = vcmp.gt.s32.totalorder 0, %v744
    %v746 = vsel %vm745, 0, %v744
    %v747 = vsub.s32 32, %v746
    %v748 = vshll.u32 %v739, %v746
    %v749 = vshrl.u32 %v731, %v747
    %v750 = vor.u32 %v748, %v749
    %v751 = vsub.s32 4294967266, %v746
    %v752 = vadd.s32 %v751, 127
    %v753 = vshll.u32 %v752, 23
    %v754 = vor.u32 4788187, %v753
    %v755 = vand.u32 2147483647, %v754
    %v757 = vcvt.s32.f32 %v750
    %v758 = vmul.f32 %v757, %v755
    %v759 = vxor.u32 %v758, 2147483648
    %v760 = vsel %vm639, %v759, %v758
    %v761 = vsub.s32 4, %v737
    %v762 = vsel %vm639, %v761, %v737
    %v763 = vsel %vm638, %v372, %v760
    %v764 = vsel %vm638, 0, %v762
    %v765 = vmul.f32 %v763, %v763
    %v766 = vmul.f32 %v765, -0.001358992
    %v767 = vadd.f32 %v766, 0.041655596
    %v768 = vmul.f32 %v765, %v767
    %v769 = vadd.f32 %v768, -0.4999988
    %v770 = vmul.f32 %v765, %v769
    %v771 = vadd.f32 1.0, %v770
    %v772 = vmul.f32 %v763, %v763
    %v773 = vmul.f32 %v772, -0.00019511016
    %v774 = vadd.f32 %v773, 0.008332121
    %v775 = vmul.f32 %v772, %v774
    %v776 = vadd.f32 %v775, -0.16666654
    %v777 = vmul.f32 %v772, %v776
    %v778 = vadd.f32 %v777, 1.0
    %v779 = vmul.f32 %v778, %v763
    %vm780 = vweird.f32 %v372
    %v781 = vadd.s32 %v764, 3
    %v782 = vand.u32 %v781, 3
    %vm783 = vcmp.lt.s32.totalorder %v782, 2
    %vm784 = vcmp.eq.s32.totalorder %v782, 0
    %v785 = vxor.u32 %v779, 2147483648
    %v786 = vsel %vm784, %v771, %v785
    %vm787 = vcmp.eq.s32.totalorder %v782, 2
    %v788 = vxor.u32 %v771, 2147483648
    %v789 = vsel %vm787, %v788, %v779
    %v790 = vsel %vm783, %v786, %v789
    %v791 = vsel %vm780, nan, %v790
    %v792 = vmul.f32 %v634, %v791
    %793 = vst [vmem:[#allocation2 + $0x8] sm:$0xff] %v792
    %v794 = vstv %s479
    %v795 = vmul.f32 %v794, %v477
    %796 = vst [vmem:[#allocation2 + $0x10] sm:$0xff] %v795
    %v797 = vld [vmem:[#allocation2] sm:$0xff]
    %v798 = vld [vmem:[#allocation2 + $0x8] sm:$0xff]
    %v799 = vld [vmem:[#allocation2 + $0x10] sm:$0xff]
    %s800 = scalar_lea.vmem [#allocation7], 768
    %v801 = vld [vmem:[%s800] sm:$0xff]
    %v802 = vld [vmem:[%s800 + $0x8] sm:$0xff]
    %v803 = vld [vmem:[%s800 + $0x10] sm:$0xff]
    %v804 = vld [vmem:[%s800 + $0x18] sm:$0xff]
    %v805 = vld [vmem:[%s800 + $0x20] sm:$0xff]
    %v806 = vld [vmem:[%s800 + $0x28] sm:$0xff]
    %v807 = vld [vmem:[%s800 + $0x30] sm:$0xff]
    %v808 = vld [vmem:[%s800 + $0x38] sm:$0xff]
    %v809 = vld [vmem:[%s800 + $0x40] sm:$0xff]
    %v810 = vld [vmem:[%s800 + $0x48] sm:$0xff]
    %v811 = vld [vmem:[%s800 + $0x50] sm:$0xff]
    %v812 = vld [vmem:[%s800 + $0x58] sm:$0xff]
    %v813 = vld [vmem:[%s800 + $0x60] sm:$0xff]
    %v814 = vld [vmem:[%s800 + $0x68] sm:$0xff]
    %v815 = vld [vmem:[%s800 + $0x70] sm:$0xff]
    %v816 = vld [vmem:[%s800 + $0x78] sm:$0xff]
    %v817 = vld [vmem:[%s800 + $0x80] sm:$0xff]
    %v818 = vld [vmem:[%s800 + $0x88] sm:$0xff]
    %v819 = vld [vmem:[%s800 + $0x90] sm:$0xff]
    %v820 = vld [vmem:[%s800 + $0x98] sm:$0xff]
    %v821 = vld [vmem:[%s800 + $0xa0] sm:$0xff]
    %v822 = vld [vmem:[%s800 + $0xa8] sm:$0xff]
    %v823 = vld [vmem:[%s800 + $0xb0] sm:$0xff]
    %v824 = vld [vmem:[%s800 + $0xb8] sm:$0xff]
    %v825 = vld [vmem:[%s800 + $0xc0] sm:$0xff]
    %v826 = vld [vmem:[%s800 + $0xc8] sm:$0xff]
    %v827 = vld [vmem:[%s800 + $0xd0] sm:$0xff]
    %v828 = vld [vmem:[%s800 + $0xd8] sm:$0xff]
    %v829 = vld [vmem:[%s800 + $0xe0] sm:$0xff]
    %v830 = vld [vmem:[%s800 + $0xe8] sm:$0xff]
    %v831 = vld [vmem:[%s800 + $0xf0] sm:$0xff]
    %v832 = vld [vmem:[%s800 + $0xf8] sm:$0xff]
    %v833 = vld [vmem:[%s800 + $0x100] sm:$0xff]
    %v834 = vld [vmem:[%s800 + $0x108] sm:$0xff]
    %v835 = vld [vmem:[%s800 + $0x110] sm:$0xff]
    %v836 = vld [vmem:[%s800 + $0x118] sm:$0xff]
    %v837 = vld [vmem:[%s800 + $0x120] sm:$0xff]
    %v838 = vld [vmem:[%s800 + $0x128] sm:$0xff]
    %v839 = vld [vmem:[%s800 + $0x130] sm:$0xff]
    %v840 = vld [vmem:[%s800 + $0x138] sm:$0xff]
    %v841 = vld [vmem:[%s800 + $0x140] sm:$0xff]
    %v842 = vld [vmem:[%s800 + $0x148] sm:$0xff]
    %v843 = vld [vmem:[%s800 + $0x150] sm:$0xff]
    %v844 = vld [vmem:[%s800 + $0x158] sm:$0xff]
    %v845 = vld [vmem:[%s800 + $0x160] sm:$0xff]
    %v846 = vld [vmem:[%s800 + $0x168] sm:$0xff]
    %v847 = vld [vmem:[%s800 + $0x170] sm:$0xff]
    %v848 = vld [vmem:[%s800 + $0x178] sm:$0xff]
    %v849 = vld [vmem:[%s800 + $0x180] sm:$0xff]
    %v850 = vld [vmem:[%s800 + $0x188] sm:$0xff]
    %v851 = vld [vmem:[%s800 + $0x190] sm:$0xff]
    %v852 = vld [vmem:[%s800 + $0x198] sm:$0xff]
    %v853 = vld [vmem:[%s800 + $0x1a0] sm:$0xff]
    %v854 = vld [vmem:[%s800 + $0x1a8] sm:$0xff]
    %v855 = vld [vmem:[%s800 + $0x1b0] sm:$0xff]
    %v856 = vld [vmem:[%s800 + $0x1b8] sm:$0xff]
    %v857 = vld [vmem:[%s800 + $0x1c0] sm:$0xff]
    %v858 = vld [vmem:[%s800 + $0x1c8] sm:$0xff]
    %v859 = vld [vmem:[%s800 + $0x1d0] sm:$0xff]
    %v860 = vld [vmem:[%s800 + $0x1d8] sm:$0xff]
    %v861 = vld [vmem:[%s800 + $0x1e0] sm:$0xff]
    %v862 = vld [vmem:[%s800 + $0x1e8] sm:$0xff]
    %v863 = vld [vmem:[%s800 + $0x1f0] sm:$0xff]
    %v864 = vld [vmem:[%s800 + $0x1f8] sm:$0xff]
    %v865 = vld [vmem:[%s800 + $0x200] sm:$0xff]
    %v866 = vld [vmem:[%s800 + $0x208] sm:$0xff]
    %v867 = vld [vmem:[%s800 + $0x210] sm:$0xff]
    %v868 = vld [vmem:[%s800 + $0x218] sm:$0xff]
    %v869 = vld [vmem:[%s800 + $0x220] sm:$0xff]
    %v870 = vld [vmem:[%s800 + $0x228] sm:$0xff]
    %v871 = vld [vmem:[%s800 + $0x230] sm:$0xff]
    %v872 = vld [vmem:[%s800 + $0x238] sm:$0xff]
    %v873 = vld [vmem:[%s800 + $0x240] sm:$0xff]
    %v874 = vld [vmem:[%s800 + $0x248] sm:$0xff]
    %v875 = vld [vmem:[%s800 + $0x250] sm:$0xff]
    %v876 = vld [vmem:[%s800 + $0x258] sm:$0xff]
    %v877 = vld [vmem:[%s800 + $0x260] sm:$0xff]
    %v878 = vld [vmem:[%s800 + $0x268] sm:$0xff]
    %v879 = vld [vmem:[%s800 + $0x270] sm:$0xff]
    %v880 = vld [vmem:[%s800 + $0x278] sm:$0xff]
    %v881 = vld [vmem:[%s800 + $0x280] sm:$0xff]
    %v882 = vld [vmem:[%s800 + $0x288] sm:$0xff]
    %v883 = vld [vmem:[%s800 + $0x290] sm:$0xff]
    %v884 = vld [vmem:[%s800 + $0x298] sm:$0xff]
    %v885 = vld [vmem:[%s800 + $0x2a0] sm:$0xff]
    %v886 = vld [vmem:[%s800 + $0x2a8] sm:$0xff]
    %v887 = vld [vmem:[%s800 + $0x2b0] sm:$0xff]
    %v888 = vld [vmem:[%s800 + $0x2b8] sm:$0xff]
    %v889 = vld [vmem:[%s800 + $0x2c0] sm:$0xff]
    %v890 = vld [vmem:[%s800 + $0x2c8] sm:$0xff]
    %v891 = vld [vmem:[%s800 + $0x2d0] sm:$0xff]
    %v892 = vld [vmem:[%s800 + $0x2d8] sm:$0xff]
    %v893 = vld [vmem:[%s800 + $0x2e0] sm:$0xff]
    %v894 = vld [vmem:[%s800 + $0x2e8] sm:$0xff]
    %v895 = vld [vmem:[%s800 + $0x2f0] sm:$0xff]
    %v896 = vld [vmem:[%s800 + $0x2f8] sm:$0xff]
    %s897 = scalar_lea.vmem %s5, 2
    %v898 = vld [vmem:[%s897] sm:$0x3]
    %v900 = vperm.slane %v898, 0
    %v901 = vperm.slane %v898, 1
    %904 = vmatpush.msra.mxu0 %v831
    %905 = vmatpush.msra.mxu0 %v829
    %906 = vmatpush.msra.mxu0 %v827
    %907 = vmatpush.msra.mxu0 %v825
    %908 = vmatpush.msra.mxu0 %v823
    %909 = vmatpush.msra.mxu0 %v821
    %910 = vmatpush.msra.mxu0 %v819
    %911 = vmatpush.msra.mxu0 %v817
    %912 = vmatpush.msra.mxu0 %v815
    %913 = vmatpush.msra.mxu0 %v813
    %914 = vmatpush.msra.mxu0 %v811
    %915 = vmatpush.msra.mxu0 %v809
    %916 = vmatpush.msra.mxu0 %v807
    %917 = vmatpush.msra.mxu0 %v805
    %918 = vmatpush.msra.mxu0 %v803
    %919 = vmatpush.msra.mxu0 %v801
    %920 = vmatmul.f32.gmra.mxu0 %v797
    %v921 = vpop.f32.mrf.mxu0
    %v922 = vadd.f32 %v900, %v921
    %923 = vdwg.mxu0
    %924 = vmatpush.msra.mxu0 %v863
    %925 = vmatpush.msra.mxu0 %v861
    %926 = vmatpush.msra.mxu0 %v859
    %927 = vmatpush.msra.mxu0 %v857
    %928 = vmatpush.msra.mxu0 %v855
    %929 = vmatpush.msra.mxu0 %v853
    %930 = vmatpush.msra.mxu0 %v851
    %931 = vmatpush.msra.mxu0 %v849
    %932 = vmatpush.msra.mxu0 %v847
    %933 = vmatpush.msra.mxu0 %v845
    %934 = vmatpush.msra.mxu0 %v843
    %935 = vmatpush.msra.mxu0 %v841
    %936 = vmatpush.msra.mxu0 %v839
    %937 = vmatpush.msra.mxu0 %v837
    %938 = vmatpush.msra.mxu0 %v835
    %939 = vmatpush.msra.mxu0 %v833
    %940 = vmatmul.f32.gmra.mxu0 %v798
    %v941 = vpop.f32.mrf.mxu0
    %v942 = vadd.f32 %v922, %v941
    %943 = vdwg.mxu0
    %944 = vmatpush.msra.mxu0 %v895
    %945 = vmatpush.msra.mxu0 %v893
    %946 = vmatpush.msra.mxu0 %v891
    %947 = vmatpush.msra.mxu0 %v889
    %948 = vmatpush.msra.mxu0 %v887
    %949 = vmatpush.msra.mxu0 %v885
    %950 = vmatpush.msra.mxu0 %v883
    %951 = vmatpush.msra.mxu0 %v881
    %952 = vmatpush.msra.mxu0 %v879
    %953 = vmatpush.msra.mxu0 %v877
    %954 = vmatpush.msra.mxu0 %v875
    %955 = vmatpush.msra.mxu0 %v873
    %956 = vmatpush.msra.mxu0 %v871
    %957 = vmatpush.msra.mxu0 %v869
    %958 = vmatpush.msra.mxu0 %v867
    %959 = vmatpush.msra.mxu0 %v865
    %960 = vmatmul.f32.gmra.mxu0 %v799
    %v961 = vpop.f32.mrf.mxu0
    %v962 = vadd.f32 %v942, %v961
    %963 = vdwg.mxu0
    %964 = vmatpush.msra.mxu0 %v832
    %965 = vmatpush.msra.mxu0 %v830
    %966 = vmatpush.msra.mxu0 %v828
    %967 = vmatpush.msra.mxu0 %v826
    %968 = vmatpush.msra.mxu0 %v824
    %969 = vmatpush.msra.mxu0 %v822
    %970 = vmatpush.msra.mxu0 %v820
    %971 = vmatpush.msra.mxu0 %v818
    %972 = vmatpush.msra.mxu0 %v816
    %973 = vmatpush.msra.mxu0 %v814
    %974 = vmatpush.msra.mxu0 %v812
    %975 = vmatpush.msra.mxu0 %v810
    %976 = vmatpush.msra.mxu0 %v808
    %977 = vmatpush.msra.mxu0 %v806
    %978 = vmatpush.msra.mxu0 %v804
    %979 = vmatpush.msra.mxu0 %v802
    %980 = vmatmul.f32.gmra.mxu0 %v797
    %v981 = vpop.f32.mrf.mxu0
    %v982 = vadd.f32 %v901, %v981
    %983 = vdwg.mxu0
    %984 = vmatpush.msra.mxu0 %v864
    %985 = vmatpush.msra.mxu0 %v862
    %986 = vmatpush.msra.mxu0 %v860
    %987 = vmatpush.msra.mxu0 %v858
    %988 = vmatpush.msra.mxu0 %v856
    %989 = vmatpush.msra.mxu0 %v854
    %990 = vmatpush.msra.mxu0 %v852
    %991 = vmatpush.msra.mxu0 %v850
    %992 = vmatpush.msra.mxu0 %v848
    %993 = vmatpush.msra.mxu0 %v846
    %994 = vmatpush.msra.mxu0 %v844
    %995 = vmatpush.msra.mxu0 %v842
    %996 = vmatpush.msra.mxu0 %v840
    %997 = vmatpush.msra.mxu0 %v838
    %998 = vmatpush.msra.mxu0 %v836
    %999 = vmatpush.msra.mxu0 %v834
    %1000 = vmatmul.f32.gmra.mxu0 %v798
    %v1001 = vpop.f32.mrf.mxu0
    %v1002 = vadd.f32 %v982, %v1001
    %1003 = vdwg.mxu0
    %1004 = vmatpush.msra.mxu0 %v896
    %1005 = vmatpush.msra.mxu0 %v894
    %1006 = vmatpush.msra.mxu0 %v892
    %1007 = vmatpush.msra.mxu0 %v890
    %1008 = vmatpush.msra.mxu0 %v888
    %1009 = vmatpush.msra.mxu0 %v886
    %1010 = vmatpush.msra.mxu0 %v884
    %1011 = vmatpush.msra.mxu0 %v882
    %1012 = vmatpush.msra.mxu0 %v880
    %1013 = vmatpush.msra.mxu0 %v878
    %1014 = vmatpush.msra.mxu0 %v876
    %1015 = vmatpush.msra.mxu0 %v874
    %1016 = vmatpush.msra.mxu0 %v872
    %1017 = vmatpush.msra.mxu0 %v870
    %1018 = vmatpush.msra.mxu0 %v868
    %1019 = vmatpush.msra.mxu0 %v866
    %1020 = vmatmul.f32.gmra.mxu0 %v799
    %v1021 = vpop.f32.mrf.mxu0
    %v1022 = vadd.f32 %v1002, %v1021
    %1023 = vdwg.mxu0
    %v1024 = vmul.f32 %v1022, 0.5
    %v1025 = vmul.f32 %v1022, 0.70710677
    %v1026 = vmul.f32 %v1025, %v1025
    %v1027 = vmin.f32 16.0, %v1026
    %v1028 = vmul.f32 %v1027, 2.1237322e-06
    %v1029 = vadd.f32 %v1028, 0.00028619796
    %v1030 = vmul.f32 %v1027, %v1029
    %v1031 = vadd.f32 %v1030, 0.0036580483
    %v1032 = vmul.f32 %v1027, %v1031
    %v1033 = vadd.f32 %v1032, 0.05243302
    %v1034 = vmul.f32 %v1027, %v1033
    %v1035 = vadd.f32 %v1034, 0.18741608
    %v1036 = vmul.f32 %v1027, %v1035
    %v1037 = vadd.f32 %v1036, 1.1283791
    %v1038 = vmul.f32 %v1025, %v1037
    %v1039 = vmul.f32 %v1027, 3.8918573e-05
    %v1040 = vadd.f32 %v1039, 0.001143296
    %v1041 = vmul.f32 %v1027, %v1040
    %v1042 = vadd.f32 %v1041, 0.014752088
    %v1043 = vmul.f32 %v1027, %v1042
    %v1044 = vadd.f32 %v1043, 0.112945676
    %v1045 = vmul.f32 %v1027, %v1044
    %v1046 = vadd.f32 %v1045, 0.4994258
    %v1047 = vmul.f32 %v1027, %v1046
    %v1048 = vadd.f32 %v1047, 1.0
    %v1049 = vrcp.pop %v1048
    %v1050 = vmul.f32 %v1048, %v1049
    %v1051 = vsub.f32 1.0, %v1050
    %v1052 = vmul.f32 %v1049, %v1051
    %v1053 = vadd.f32 %v1049, %v1052
    %vm1054 = vweird.f32 %v1048
    %vm1055 = vweird.f32 %v1049
    %vm1056 = vmor %vm1054, %vm1055
    %v1057 = vsel %vm1056, %v1049, %v1053
    %v1058 = vand.u32 2147483647, %v1048
    %vm1059 = vcmp.eq.f32.partialorder %v1058, 8.507059e+37
    %v1060 = vand.u32 %v1048, 2147483648
    %v1061 = vor.u32 1.1754944e-38, %v1060
    %v1062 = vsel %vm1059, %v1061, %v1057
    %v1063 = vmul.f32 %v1038, %v1062
    %v1064 = vmin.f32 %v1063, 1.0
    %v1065 = vmax.f32 %v1064, -1.0
    %v1066 = vadd.f32 %v1065, 1.0
    %v1067 = vmul.f32 %v1024, %v1066
    %s1068 = sld [smem:[#allocation3 + $0x80]]
    %s1069 = sld [smem:[#allocation3 + $0x81]]
    %v1070 = vand.u32 2147483647, %v962
    %vm1071 = vcmp.le.f32.partialorder %v1070, 0.7853982
    %vm1072 = vcmp.lt.s32.totalorder %v962, 0
    %v1073 = vand.u32 %v962, 2139095040
    %v1074 = vshrl.u32 %v1073, 23
    %v1075 = vsub.s32 %v1074, 127
    %v1076 = vand.u32 2147483647, %v962
    %v1077 = vand.u32 %v1076, 8388607
    %v1078 = vor.u32 %v1077, 8388608
    %v1079 = vsub.s32 0, %v1078
    %v1080 = vadd.s32 %v1075, 1
    %vm1081 = vcmp.gt.s32.totalorder %v1080, 0
    %v1082 = vsel %vm1081, %v1080, 0
    %v1083 = vshrl.u32 %v1082, 5
    %v1084 = vand.u32 %v1082, 31
    %v1085 = vsub.s32 32, %v1084
    %v1086 = vshrl.u32 683565275, %v1085
    %v1087 = vshll.u32 683565275, %v1084
    %v1088 = vshrl.u32 2475754826, %v1085
    %v1089 = vor.u32 %v1087, %v1088
    %v1090 = vshll.u32 2475754826, %v1084
    %v1091 = vshrl.u32 2131351028, %v1085
    %v1092 = vor.u32 %v1090, %v1091
    %v1093 = vshll.u32 2131351028, %v1084
    %v1094 = vshrl.u32 2102212464, %v1085
    %v1095 = vor.u32 %v1093, %v1094
    %v1096 = vshll.u32 2102212464, %v1084
    %v1097 = vshrl.u32 920167782, %v1085
    %v1098 = vor.u32 %v1096, %v1097
    %v1099 = vshll.u32 920167782, %v1084
    %v1100 = vshrl.u32 1326507024, %v1085
    %v1101 = vor.u32 %v1099, %v1100
    %vm1102 = vcmp.lt.s32.totalorder %v1083, 1
    %vm1103 = vcmp.lt.s32.totalorder %v1083, 2
    %vm1104 = vcmp.lt.s32.totalorder %v1083, 3
    %vm1105 = vcmp.lt.s32.totalorder %v1083, 4
    %v1106 = vsel %vm1102, %v1086, %v1089
    %v1107 = vsel %vm1105, %v1095, 2102212464
    %v1108 = vsel %vm1104, %v1092, %v1107
    %v1109 = vsel %vm1103, %v1106, %v1108
    %v1110 = vsel %vm1102, %v1089, %v1092
    %v1111 = vsel %vm1105, %v1098, 920167782
    %v1112 = vsel %vm1104, %v1095, %v1111
    %v1113 = vsel %vm1103, %v1110, %v1112
    %v1114 = vsel %vm1102, %v1092, %v1095
    %v1115 = vsel %vm1105, %v1101, 1326507024
    %v1116 = vsel %vm1104, %v1098, %v1115
    %v1117 = vsel %vm1103, %v1114, %v1116
    %v1118 = vshll.u32 %v1078, 8
    %v1119 = vand.u32 %v1118, 65535
    %v1120 = vshrl.u32 %v1118, 16
    %v1121 = vand.u32 %v1117, 65535
    %v1122 = vshrl.u32 %v1117, 16
    %v1123 = vmul.u32 %v1119, %v1121
    %v1124 = vmul.u32 %v1119, %v1122
    %v1125 = vmul.u32 %v1120, %v1121
    %v1126 = vmul.u32 %v1120, %v1122
    %v1127 = vshll.u32 %v1124, 16
    %v1128 = vshrl.u32 %v1124, 16
    %v1129 = vshll.u32 %v1125, 16
    %v1130 = vshrl.u32 %v1125, 16
    %vm1131 = vc.u32 %v1123, %v1127
    %v1132 = vsel %vm1131, 1, 0
    %v1133 = vadd.s32 %v1123, %v1127
    %v1134 = vadd.s32 %v1126, %v1132
    %vm1135 = vc.u32 %v1133, %v1129
    %v1136 = vsel %vm1135, 1, 0
    %v1137 = vadd.s32 %v1133, %v1129
    %v1138 = vadd.s32 %v1134, %v1136
    %v1139 = vadd.s32 %v1138, %v1128
    %v1140 = vadd.s32 %v1139, %v1130
    %v1141 = vand.u32 %v1118, 65535
    %v1142 = vshrl.u32 %v1118, 16
    %v1143 = vand.u32 %v1113, 65535
    %v1144 = vshrl.u32 %v1113, 16
    %v1145 = vmul.u32 %v1141, %v1143
    %v1146 = vmul.u32 %v1141, %v1144
    %v1147 = vmul.u32 %v1142, %v1143
    %v1148 = vmul.u32 %v1142, %v1144
    %v1149 = vshll.u32 %v1146, 16
    %v1150 = vshrl.u32 %v1146, 16
    %v1151 = vshll.u32 %v1147, 16
    %v1152 = vshrl.u32 %v1147, 16
    %vm1153 = vc.u32 %v1145, %v1149
    %v1154 = vsel %vm1153, 1, 0
    %v1155 = vadd.s32 %v1145, %v1149
    %v1156 = vadd.s32 %v1148, %v1154
    %vm1157 = vc.u32 %v1155, %v1151
    %v1158 = vsel %vm1157, 1, 0
    %v1159 = vadd.s32 %v1155, %v1151
    %v1160 = vadd.s32 %v1156, %v1158
    %v1161 = vadd.s32 %v1160, %v1150
    %v1162 = vadd.s32 %v1161, %v1152
    %v1163 = vmul.u32 %v1118, %v1109
    %v1164 = vadd.s32 %v1140, %v1159
    %vm1165 = vc.u32 %v1140, %v1159
    %v1166 = vadd.s32 %v1162, 1
    %v1167 = vsel %vm1165, %v1166, %v1162
    %v1168 = vadd.s32 %v1163, %v1167
    %v1169 = vadd.s32 %v1168, 536870912
    %v1170 = vshrl.u32 %v1169, 30
    %v1171 = vshll.u32 %v1170, 30
    %v1172 = vsub.s32 %v1168, %v1171
    %vm1173 = vcmp.lt.s32.totalorder %v1172, 0
    %v1174 = vsub.s32 0, %v1172
    %v1175 = vsel %vm1173, %v1174, %v1172
    %v1176 = vclz %v1175
    %v1177 = vsub.s32 %v1176, 2
    %vm1178 = vcmp.gt.s32.totalorder 0, %v1177
    %v1179 = vsel %vm1178, 0, %v1177
    %v1180 = vsub.s32 32, %v1179
    %v1181 = vshll.u32 %v1172, %v1179
    %v1182 = vshrl.u32 %v1164, %v1180
    %v1183 = vor.u32 %v1181, %v1182
    %v1184 = vsub.s32 4294967266, %v1179
    %v1185 = vadd.s32 %v1184, 127
    %v1186 = vshll.u32 %v1185, 23
    %v1187 = vor.u32 4788187, %v1186
    %v1188 = vand.u32 2147483647, %v1187
    %v1190 = vcvt.s32.f32 %v1183
    %v1191 = vmul.f32 %v1190, %v1188
    %v1192 = vxor.u32 %v1191, 2147483648
    %v1193 = vsel %vm1072, %v1192, %v1191
    %v1194 = vsub.s32 4, %v1170
    %v1195 = vsel %vm1072, %v1194, %v1170
    %v1196 = vsel %vm1071, %v962, %v1193
    %v1197 = vsel %vm1071, 0, %v1195
    %v1198 = vmul.f32 %v1196, %v1196
    %v1199 = vmul.f32 %v1198, -0.001358992
    %v1200 = vadd.f32 %v1199, 0.041655596
    %v1201 = vmul.f32 %v1198, %v1200
    %v1202 = vadd.f32 %v1201, -0.4999988
    %v1203 = vmul.f32 %v1198, %v1202
    %v1204 = vadd.f32 1.0, %v1203
    %v1205 = vmul.f32 %v1196, %v1196
    %v1206 = vmul.f32 %v1205, -0.00019511016
    %v1207 = vadd.f32 %v1206, 0.008332121
    %v1208 = vmul.f32 %v1205, %v1207
    %v1209 = vadd.f32 %v1208, -0.16666654
    %v1210 = vmul.f32 %v1205, %v1209
    %v1211 = vadd.f32 %v1210, 1.0
    %v1212 = vmul.f32 %v1211, %v1196
    %vm1213 = vweird.f32 %v962
    %v1214 = vand.u32 %v1197, 3
    %vm1215 = vcmp.lt.s32.totalorder %v1214, 2
    %vm1216 = vcmp.eq.s32.totalorder %v1214, 0
    %v1217 = vxor.u32 %v1212, 2147483648
    %v1218 = vsel %vm1216, %v1204, %v1217
    %vm1219 = vcmp.eq.s32.totalorder %v1214, 2
    %v1220 = vxor.u32 %v1204, 2147483648
    %v1221 = vsel %vm1219, %v1220, %v1212
    %v1222 = vsel %vm1215, %v1218, %v1221
    %v1223 = vsel %vm1213, nan, %v1222
    %v1224 = vstv %s1068
    %v1225 = vmul.f32 %v1224, %v1223
    %1226 = vst [vmem:[#allocation2] sm:$0xff] %v1225
    %v1227 = vand.u32 2147483647, %v962
    %vm1228 = vcmp.le.f32.partialorder %v1227, 0.7853982
    %vm1229 = vcmp.lt.s32.totalorder %v962, 0
    %v1230 = vand.u32 %v962, 2139095040
    %v1231 = vshrl.u32 %v1230, 23
    %v1232 = vsub.s32 %v1231, 127
    %v1233 = vand.u32 2147483647, %v962
    %v1234 = vand.u32 %v1233, 8388607
    %v1235 = vor.u32 %v1234, 8388608
    %v1236 = vsub.s32 0, %v1235
    %v1237 = vadd.s32 %v1232, 1
    %vm1238 = vcmp.gt.s32.totalorder %v1237, 0
    %v1239 = vsel %vm1238, %v1237, 0
    %v1240 = vshrl.u32 %v1239, 5
    %v1241 = vand.u32 %v1239, 31
    %v1242 = vsub.s32 32, %v1241
    %v1243 = vshrl.u32 683565275, %v1242
    %v1244 = vshll.u32 683565275, %v1241
    %v1245 = vshrl.u32 2475754826, %v1242
    %v1246 = vor.u32 %v1244, %v1245
    %v1247 = vshll.u32 2475754826, %v1241
    %v1248 = vshrl.u32 2131351028, %v1242
    %v1249 = vor.u32 %v1247, %v1248
    %v1250 = vshll.u32 2131351028, %v1241
    %v1251 = vshrl.u32 2102212464, %v1242
    %v1252 = vor.u32 %v1250, %v1251
    %v1253 = vshll.u32 2102212464, %v1241
    %v1254 = vshrl.u32 920167782, %v1242
    %v1255 = vor.u32 %v1253, %v1254
    %v1256 = vshll.u32 920167782, %v1241
    %v1257 = vshrl.u32 1326507024, %v1242
    %v1258 = vor.u32 %v1256, %v1257
    %vm1259 = vcmp.lt.s32.totalorder %v1240, 1
    %vm1260 = vcmp.lt.s32.totalorder %v1240, 2
    %vm1261 = vcmp.lt.s32.totalorder %v1240, 3
    %vm1262 = vcmp.lt.s32.totalorder %v1240, 4
    %v1263 = vsel %vm1259, %v1243, %v1246
    %v1264 = vsel %vm1262, %v1252, 2102212464
    %v1265 = vsel %vm1261, %v1249, %v1264
    %v1266 = vsel %vm1260, %v1263, %v1265
    %v1267 = vsel %vm1259, %v1246, %v1249
    %v1268 = vsel %vm1262, %v1255, 920167782
    %v1269 = vsel %vm1261, %v1252, %v1268
    %v1270 = vsel %vm1260, %v1267, %v1269
    %v1271 = vsel %vm1259, %v1249, %v1252
    %v1272 = vsel %vm1262, %v1258, 1326507024
    %v1273 = vsel %vm1261, %v1255, %v1272
    %v1274 = vsel %vm1260, %v1271, %v1273
    %v1275 = vshll.u32 %v1235, 8
    %v1276 = vand.u32 %v1275, 65535
    %v1277 = vshrl.u32 %v1275, 16
    %v1278 = vand.u32 %v1274, 65535
    %v1279 = vshrl.u32 %v1274, 16
    %v1280 = vmul.u32 %v1276, %v1278
    %v1281 = vmul.u32 %v1276, %v1279
    %v1282 = vmul.u32 %v1277, %v1278
    %v1283 = vmul.u32 %v1277, %v1279
    %v1284 = vshll.u32 %v1281, 16
    %v1285 = vshrl.u32 %v1281, 16
    %v1286 = vshll.u32 %v1282, 16
    %v1287 = vshrl.u32 %v1282, 16
    %vm1288 = vc.u32 %v1280, %v1284
    %v1289 = vsel %vm1288, 1, 0
    %v1290 = vadd.s32 %v1280, %v1284
    %v1291 = vadd.s32 %v1283, %v1289
    %vm1292 = vc.u32 %v1290, %v1286
    %v1293 = vsel %vm1292, 1, 0
    %v1294 = vadd.s32 %v1290, %v1286
    %v1295 = vadd.s32 %v1291, %v1293
    %v1296 = vadd.s32 %v1295, %v1285
    %v1297 = vadd.s32 %v1296, %v1287
    %v1298 = vand.u32 %v1275, 65535
    %v1299 = vshrl.u32 %v1275, 16
    %v1300 = vand.u32 %v1270, 65535
    %v1301 = vshrl.u32 %v1270, 16
    %v1302 = vmul.u32 %v1298, %v1300
    %v1303 = vmul.u32 %v1298, %v1301
    %v1304 = vmul.u32 %v1299, %v1300
    %v1305 = vmul.u32 %v1299, %v1301
    %v1306 = vshll.u32 %v1303, 16
    %v1307 = vshrl.u32 %v1303, 16
    %v1308 = vshll.u32 %v1304, 16
    %v1309 = vshrl.u32 %v1304, 16
    %vm1310 = vc.u32 %v1302, %v1306
    %v1311 = vsel %vm1310, 1, 0
    %v1312 = vadd.s32 %v1302, %v1306
    %v1313 = vadd.s32 %v1305, %v1311
    %vm1314 = vc.u32 %v1312, %v1308
    %v1315 = vsel %vm1314, 1, 0
    %v1316 = vadd.s32 %v1312, %v1308
    %v1317 = vadd.s32 %v1313, %v1315
    %v1318 = vadd.s32 %v1317, %v1307
    %v1319 = vadd.s32 %v1318, %v1309
    %v1320 = vmul.u32 %v1275, %v1266
    %v1321 = vadd.s32 %v1297, %v1316
    %vm1322 = vc.u32 %v1297, %v1316
    %v1323 = vadd.s32 %v1319, 1
    %v1324 = vsel %vm1322, %v1323, %v1319
    %v1325 = vadd.s32 %v1320, %v1324
    %v1326 = vadd.s32 %v1325, 536870912
    %v1327 = vshrl.u32 %v1326, 30
    %v1328 = vshll.u32 %v1327, 30
    %v1329 = vsub.s32 %v1325, %v1328
    %vm1330 = vcmp.lt.s32.totalorder %v1329, 0
    %v1331 = vsub.s32 0, %v1329
    %v1332 = vsel %vm1330, %v1331, %v1329
    %v1333 = vclz %v1332
    %v1334 = vsub.s32 %v1333, 2
    %vm1335 = vcmp.gt.s32.totalorder 0, %v1334
    %v1336 = vsel %vm1335, 0, %v1334
    %v1337 = vsub.s32 32, %v1336
    %v1338 = vshll.u32 %v1329, %v1336
    %v1339 = vshrl.u32 %v1321, %v1337
    %v1340 = vor.u32 %v1338, %v1339
    %v1341 = vsub.s32 4294967266, %v1336
    %v1342 = vadd.s32 %v1341, 127
    %v1343 = vshll.u32 %v1342, 23
    %v1344 = vor.u32 4788187, %v1343
    %v1345 = vand.u32 2147483647, %v1344
    %v1347 = vcvt.s32.f32 %v1340
    %v1348 = vmul.f32 %v1347, %v1345
    %v1349 = vxor.u32 %v1348, 2147483648
    %v1350 = vsel %vm1229, %v1349, %v1348
    %v1351 = vsub.s32 4, %v1327
    %v1352 = vsel %vm1229, %v1351, %v1327
    %v1353 = vsel %vm1228, %v962, %v1350
    %v1354 = vsel %vm1228, 0, %v1352
    %v1355 = vmul.f32 %v1353, %v1353
    %v1356 = vmul.f32 %v1355, -0.001358992
    %v1357 = vadd.f32 %v1356, 0.041655596
    %v1358 = vmul.f32 %v1355, %v1357
    %v1359 = vadd.f32 %v1358, -0.4999988
    %v1360 = vmul.f32 %v1355, %v1359
    %v1361 = vadd.f32 1.0, %v1360
    %v1362 = vmul.f32 %v1353, %v1353
    %v1363 = vmul.f32 %v1362, -0.00019511016
    %v1364 = vadd.f32 %v1363, 0.008332121
    %v1365 = vmul.f32 %v1362, %v1364
    %v1366 = vadd.f32 %v1365, -0.16666654
    %v1367 = vmul.f32 %v1362, %v1366
    %v1368 = vadd.f32 %v1367, 1.0
    %v1369 = vmul.f32 %v1368, %v1353
    %vm1370 = vweird.f32 %v962
    %v1371 = vadd.s32 %v1354, 3
    %v1372 = vand.u32 %v1371, 3
    %vm1373 = vcmp.lt.s32.totalorder %v1372, 2
    %vm1374 = vcmp.eq.s32.totalorder %v1372, 0
    %v1375 = vxor.u32 %v1369, 2147483648
    %v1376 = vsel %vm1374, %v1361, %v1375
    %vm1377 = vcmp.eq.s32.totalorder %v1372, 2
    %v1378 = vxor.u32 %v1361, 2147483648
    %v1379 = vsel %vm1377, %v1378, %v1369
    %v1380 = vsel %vm1373, %v1376, %v1379
    %v1381 = vsel %vm1370, nan, %v1380
    %v1382 = vmul.f32 %v1224, %v1381
    %1383 = vst [vmem:[#allocation2 + $0x8] sm:$0xff] %v1382
    %v1384 = vstv %s1069
    %v1385 = vmul.f32 %v1384, %v1067
    %1386 = vst [vmem:[#allocation2 + $0x10] sm:$0xff] %v1385
    %v1387 = vld [vmem:[#allocation2] sm:$0xff]
    %v1388 = vld [vmem:[#allocation2 + $0x8] sm:$0xff]
    %v1389 = vld [vmem:[#allocation2 + $0x10] sm:$0xff]
    %v1390 = vld [vmem:[#allocation9] sm:$0xff]
    %v1391 = vld [vmem:[#allocation9 + $0x8] sm:$0xff]
    %v1392 = vld [vmem:[#allocation9 + $0x10] sm:$0xff]
    %v1393 = vld [vmem:[#allocation9 + $0x18] sm:$0xff]
    %v1394 = vld [vmem:[#allocation9 + $0x20] sm:$0xff]
    %v1395 = vld [vmem:[#allocation9 + $0x28] sm:$0xff]
    %v1396 = vld [vmem:[#allocation9 + $0x30] sm:$0xff]
    %v1397 = vld [vmem:[#allocation9 + $0x38] sm:$0xff]
    %v1398 = vld [vmem:[#allocation9 + $0x40] sm:$0xff]
    %v1399 = vld [vmem:[#allocation9 + $0x48] sm:$0xff]
    %v1400 = vld [vmem:[#allocation9 + $0x50] sm:$0xff]
    %v1401 = vld [vmem:[#allocation9 + $0x58] sm:$0xff]
    %v1402 = vld [vmem:[#allocation9 + $0x60] sm:$0xff]
    %v1403 = vld [vmem:[#allocation9 + $0x68] sm:$0xff]
    %v1404 = vld [vmem:[#allocation9 + $0x70] sm:$0xff]
    %v1405 = vld [vmem:[#allocation9 + $0x78] sm:$0xff]
    %v1406 = vld [vmem:[#allocation9 + $0x80] sm:$0xff]
    %v1407 = vld [vmem:[#allocation9 + $0x88] sm:$0xff]
    %v1408 = vld [vmem:[#allocation9 + $0x90] sm:$0xff]
    %v1409 = vld [vmem:[#allocation9 + $0x98] sm:$0xff]
    %v1410 = vld [vmem:[#allocation9 + $0xa0] sm:$0xff]
    %v1411 = vld [vmem:[#allocation9 + $0xa8] sm:$0xff]
    %v1412 = vld [vmem:[#allocation9 + $0xb0] sm:$0xff]
    %v1413 = vld [vmem:[#allocation9 + $0xb8] sm:$0xff]
    %v1414 = vld [vmem:[#allocation9 + $0xc0] sm:$0xff]
    %v1415 = vld [vmem:[#allocation9 + $0xc8] sm:$0xff]
    %v1416 = vld [vmem:[#allocation9 + $0xd0] sm:$0xff]
    %v1417 = vld [vmem:[#allocation9 + $0xd8] sm:$0xff]
    %v1418 = vld [vmem:[#allocation9 + $0xe0] sm:$0xff]
    %v1419 = vld [vmem:[#allocation9 + $0xe8] sm:$0xff]
    %v1420 = vld [vmem:[#allocation9 + $0xf0] sm:$0xff]
    %v1421 = vld [vmem:[#allocation9 + $0xf8] sm:$0xff]
    %v1422 = vld [vmem:[#allocation9 + $0x100] sm:$0xff]
    %v1423 = vld [vmem:[#allocation9 + $0x108] sm:$0xff]
    %v1424 = vld [vmem:[#allocation9 + $0x110] sm:$0xff]
    %v1425 = vld [vmem:[#allocation9 + $0x118] sm:$0xff]
    %v1426 = vld [vmem:[#allocation9 + $0x120] sm:$0xff]
    %v1427 = vld [vmem:[#allocation9 + $0x128] sm:$0xff]
    %v1428 = vld [vmem:[#allocation9 + $0x130] sm:$0xff]
    %v1429 = vld [vmem:[#allocation9 + $0x138] sm:$0xff]
    %v1430 = vld [vmem:[#allocation9 + $0x140] sm:$0xff]
    %v1431 = vld [vmem:[#allocation9 + $0x148] sm:$0xff]
    %v1432 = vld [vmem:[#allocation9 + $0x150] sm:$0xff]
    %v1433 = vld [vmem:[#allocation9 + $0x158] sm:$0xff]
    %v1434 = vld [vmem:[#allocation9 + $0x160] sm:$0xff]
    %v1435 = vld [vmem:[#allocation9 + $0x168] sm:$0xff]
    %v1436 = vld [vmem:[#allocation9 + $0x170] sm:$0xff]
    %v1437 = vld [vmem:[#allocation9 + $0x178] sm:$0xff]
    %v1438 = vld [vmem:[%s7] sm:$0x1]
    %v1440 = vperm.slane %v1438, 0
    %1442 = vmatpush.msra.mxu0 %v1405
    %1443 = vmatpush.msra.mxu0 %v1404
    %1444 = vmatpush.msra.mxu0 %v1403
    %1445 = vmatpush.msra.mxu0 %v1402
    %1446 = vmatpush.msra.mxu0 %v1401
    %1447 = vmatpush.msra.mxu0 %v1400
    %1448 = vmatpush.msra.mxu0 %v1399
    %1449 = vmatpush.msra.mxu0 %v1398
    %1450 = vmatpush.msra.mxu0 %v1397
    %1451 = vmatpush.msra.mxu0 %v1396
    %1452 = vmatpush.msra.mxu0 %v1395
    %1453 = vmatpush.msra.mxu0 %v1394
    %1454 = vmatpush.msra.mxu0 %v1393
    %1455 = vmatpush.msra.mxu0 %v1392
    %1456 = vmatpush.msra.mxu0 %v1391
    %1457 = vmatpush.msra.mxu0 %v1390
    %1458 = vmatmul.f32.gmra.mxu0 %v1387
    %v1459 = vpop.f32.mrf.mxu0
    %v1460 = vadd.f32 %v1440, %v1459
    %1461 = vdwg.mxu0
    %1462 = vmatpush.msra.mxu0 %v1421
    %1463 = vmatpush.msra.mxu0 %v1420
    %1464 = vmatpush.msra.mxu0 %v1419
    %1465 = vmatpush.msra.mxu0 %v1418
    %1466 = vmatpush.msra.mxu0 %v1417
    %1467 = vmatpush.msra.mxu0 %v1416
    %1468 = vmatpush.msra.mxu0 %v1415
    %1469 = vmatpush.msra.mxu0 %v1414
    %1470 = vmatpush.msra.mxu0 %v1413
    %1471 = vmatpush.msra.mxu0 %v1412
    %1472 = vmatpush.msra.mxu0 %v1411
    %1473 = vmatpush.msra.mxu0 %v1410
    %1474 = vmatpush.msra.mxu0 %v1409
    %1475 = vmatpush.msra.mxu0 %v1408
    %1476 = vmatpush.msra.mxu0 %v1407
    %1477 = vmatpush.msra.mxu0 %v1406
    %1478 = vmatmul.f32.gmra.mxu0 %v1388
    %v1479 = vpop.f32.mrf.mxu0
    %v1480 = vadd.f32 %v1460, %v1479
    %1481 = vdwg.mxu0
    %1482 = vmatpush.msra.mxu0 %v1437
    %1483 = vmatpush.msra.mxu0 %v1436
    %1484 = vmatpush.msra.mxu0 %v1435
    %1485 = vmatpush.msra.mxu0 %v1434
    %1486 = vmatpush.msra.mxu0 %v1433
    %1487 = vmatpush.msra.mxu0 %v1432
    %1488 = vmatpush.msra.mxu0 %v1431
    %1489 = vmatpush.msra.mxu0 %v1430
    %1490 = vmatpush.msra.mxu0 %v1429
    %1491 = vmatpush.msra.mxu0 %v1428
    %1492 = vmatpush.msra.mxu0 %v1427
    %1493 = vmatpush.msra.mxu0 %v1426
    %1494 = vmatpush.msra.mxu0 %v1425
    %1495 = vmatpush.msra.mxu0 %v1424
    %1496 = vmatpush.msra.mxu0 %v1423
    %1497 = vmatpush.msra.mxu0 %v1422
    %1498 = vmatmul.f32.gmra.mxu0 %v1389
    %v1499 = vpop.f32.mrf.mxu0
    %v1500 = vadd.f32 %v1480, %v1499
    %1501 = vdwg.mxu0
    %1502 = vst [vmem:[%s8] sm:$0xff] %v1500
    // Predicated region
    $region50: #{_lambda_.1} parent=1 // pred_check
      _
    $region51: #{_lambda_.1} parent=1 // pred_check_branch
      %1504 = sbr.rel (0) target = $region53
    $region52: #{_lambda_.1} parent=1 // pred_region
      _
    $region53: #{_lambda_.1} parent=1 // pred_fallthru
      _
    // Predicated region
    $region54: #{_lambda_.1} parent=1 // pred_check
      _
    $region55: #{_lambda_.1} parent=1 // pred_check_branch
      %1506 = sbr.rel (0) target = $region57
    $region56: #{_lambda_.1} parent=1 // pred_region
      _
    $region57: #{_lambda_.1} parent=1 // pred_fallthru
      _
    %1507 = vsyncpa [#allocation4], 1
    %1508 = vsyncpa [#allocation8], 1
    %1509 = vsyncpa [#allocation5], 1

</llo_original>
